<compile_context>
chip_gen: v7x
topology: tpu7x:2x2x1
jax: 0.10.0
libtpu: 0.0.40
codegen_flags: <defaults>
</compile_context>

<pallas_src>
import functools

import jax
import jax.numpy as jnp
from jax import lax
from jax.experimental import pallas as pl
from jax.experimental.pallas import tpu as pltpu


def gru_classifier_kernel(
    # inputs -------------------------------------------------------------
    ids_ref,       # (Tt*Bp, 1) int32 : streamed token ids for this time block
    emb_ref,       # (Vp, E)  f32     : resident embedding table (row-padded)
    w_ih_f_ref,    # (E, 3H)  f32     : forward input->hidden, stacked [r|z|n]
    w_hh_f_ref,    # (H, 3H)  f32     : forward hidden->hidden, stacked [r|z|n]
    b_gi_f_ref,    # (1, 3H)  f32     : forward gi bias (r/z parts have b_hh folded)
    b_hn_f_ref,    # (1, H)   f32     : forward b_hh n-gate bias
    w_ih_b_ref,    # (E, 3H)  f32     : reverse input->hidden, stacked [r|z|n]
    b_gi_b_ref,    # (1, 3H)  f32
    b_hn_b_ref,    # (1, H)   f32
    w_fc_ref,      # (2H, C)  f32
    b_fc_ref,      # (1, C)   f32
    # output -------------------------------------------------------------
    out_ref,       # (Bp, C)  f32 softmax probabilities
    # scratch ------------------------------------------------------------
    h_ref,         # (Bp, H)  f32 : forward hidden carry across time blocks
    gi_ref,        # (Tt*Bp, 3H) f32 : hoisted input->hidden gate pre-activations
    *,
    time_block, padded_batch, hidden, vocab_padded, unroll,
):
    Tt, Bp, H, Vp = time_block, padded_batch, hidden, vocab_padded
    t_blk = pl.program_id(0)

    @pl.when(t_blk == 0)
    def _init():
        h_ref[...] = jnp.zeros_like(h_ref)

    # ---- In-kernel embedding gather: one-hot @ resident table (MXU). ----
    ids = ids_ref[...]                                               # (Tt*Bp, 1)
    onehot = jnp.where(
        ids == lax.broadcasted_iota(jnp.int32, (Tt * Bp, Vp), 1), 1.0, 0.0)
    x_blk = jnp.dot(onehot, emb_ref[...],
                    preferred_element_type=jnp.float32)              # (Tt*Bp, E)

    # ---- Hoisted input->hidden matmul for the whole block: one N=3H MXU call
    # (instead of Tt small ones on the serial chain), biases folded in. ----
    gi_ref[...] = (
        jnp.dot(x_blk, w_ih_f_ref[...], preferred_element_type=jnp.float32)
        + b_gi_f_ref[...])

    w_hh = w_hh_f_ref[...]                                           # (H, 3H)
    b_hn = jnp.broadcast_to(b_hn_f_ref[...], (Bp, H))                # hoisted bcast

    # ---- Serial recurrence: one fused h @ [Whr|Whz|Whn] matmul per step,
    # lane-packed r/z sigmoid, partial unroll to bound vreg live ranges. ----
    def step(t, h):
        row = pl.multiple_of(t * Bp, Bp)
        gi_t = gi_ref[pl.ds(row, Bp), :]                             # (Bp, 3H)
        gh = jnp.dot(h, w_hh, preferred_element_type=jnp.float32)    # (Bp, 3H)
        rz = jax.nn.sigmoid(gi_t[:, :2 * H] + gh[:, :2 * H])         # one EUP pass
        r = rz[:, :H]
        z = rz[:, H:]
        n = jnp.tanh(gi_t[:, 2 * H:] + r * (gh[:, 2 * H:] + b_hn))
        return (1.0 - z) * n + z * h

    h = lax.fori_loop(0, Tt, step, h_ref[...], unroll=unroll)
    h_ref[...] = h

    # ---- Final block: reverse-direction single step on x[T-1], FC, softmax. ----
    @pl.when(t_blk == pl.num_programs(0) - 1)
    def _finalize():
        ids_last = ids_ref[pl.ds((Tt - 1) * Bp, Bp), :]              # (Bp, 1)
        oh_last = jnp.where(
            ids_last == lax.broadcasted_iota(jnp.int32, (Bp, Vp), 1), 1.0, 0.0)
        x_last = jnp.dot(oh_last, emb_ref[...],
                         preferred_element_type=jnp.float32)         # (Bp, E)
        # h_prev = 0 for the reverse output at time T-1, so the reverse W_hh
        # matmuls drop out exactly; only the reverse biases remain.
        gi_b = (jnp.dot(x_last, w_ih_b_ref[...],
                        preferred_element_type=jnp.float32)
                + b_gi_b_ref[...])
        rz_b = jax.nn.sigmoid(gi_b[:, :2 * H])
        r_b = rz_b[:, :H]
        z_b = rz_b[:, H:]
        n_b = jnp.tanh(gi_b[:, 2 * H:] + r_b * b_hn_b_ref[...])
        h_bwd = (1.0 - z_b) * n_b

        # concat-free FC head: [h_fwd, h_bwd] @ W_fc == h_fwd @ W[:H] + h_bwd @ W[H:]
        wfc = w_fc_ref[...]
        logits = (jnp.dot(h, wfc[:H, :], preferred_element_type=jnp.float32)
                  + jnp.dot(h_bwd, wfc[H:, :], preferred_element_type=jnp.float32)
                  + b_fc_ref[...])
        logits = logits - jnp.max(logits, axis=1, keepdims=True)
        e = jnp.exp(logits)
        # Exact divide: runs once on a tiny tile; keeps rows summing to 1.
        out_ref[...] = e / jnp.sum(e, axis=1, keepdims=True)


def _pick_time_block(T, Bp, H, E, Vp, budget_bytes=4 << 20, cap=128):
    """Largest divisor of T (<= cap) whose per-block working set fits the budget."""
    per_row = 4 * (1 + 3 * H + E + Vp)    # ids + gi scratch + gathered x + one-hot
    best = 1
    for d in range(1, min(T, cap) + 1):
        if T % d == 0 and d * Bp * per_row <= budget_bytes:
            best = d
    return best


def user_classification_forward(text, params, *, time_block=None):
    """text: (T, B) int32 token ids. Returns (softmax_probs (B, C), None, None)."""
    emb_w = params["embedding"]
    T, B = text.shape
    V, E = emb_w.shape
    H = params["w_hh_f"].shape[0]
    C = params["b_fc"].shape[1]

    if V > 1024 or V * E * 4 > (2 << 20):
        # TODO(synk): for large vocabularies, pre-gather embeddings in the wrapper
        # (bf16) and stream (Tt*Bp, E) activation blocks instead of the in-kernel
        # one-hot gather (the table would not be VMEM resident).
        raise NotImplementedError(
            "in-kernel embedding gather assumes a small, VMEM-resident table")

    # Pad batch to a full f32 sublane group; pad vocab rows to a multiple of 8.
    Bp = max(8, ((B + 7) // 8) * 8)
    Vp = ((V + 7) // 8) * 8

    if time_block is None:
        time_block = _pick_time_block(T, Bp, H, E, Vp)
    assert T % time_block == 0, "time_block must divide T"

    # Token ids: pad batch, flatten time-major to (T*Bp, 1) so each grid step
    # streams a lane-friendly (Tt*Bp, 1) block.
    ids = text.astype(jnp.int32)
    if Bp != B:
        ids = jnp.pad(ids, ((0, 0), (0, Bp - B)))
    ids2d = ids.reshape(T * Bp, 1)

    emb_p = emb_w.astype(jnp.float32)
    if Vp != V:
        emb_p = jnp.pad(emb_p, ((0, Vp - V), (0, 0)))

    # --- fold biases wrapper-side (one-time XLA work). Gate order is [r, z, n];
    # r/z get b_ih + b_hh, the n-gate b_hh stays separate (multiplied by r). ---
    b_ih_f, b_hh_f = params["b_ih_f"], params["b_hh_f"]
    b_gi_f = b_ih_f + jnp.concatenate(
        [b_hh_f[:, :2 * H], jnp.zeros((1, H), b_hh_f.dtype)], axis=1)
    b_hn_f = b_hh_f[:, 2 * H:]
    b_ih_b, b_hh_b = params["b_ih_b"], params["b_hh_b"]
    b_gi_b = b_ih_b + jnp.concatenate(
        [b_hh_b[:, :2 * H], jnp.zeros((1, H), b_hh_b.dtype)], axis=1)
    b_hn_b = b_hh_b[:, 2 * H:]
    # NOTE: w_hh_b never influences gru_out[-1][:, H:] (zero initial reverse state),
    # so it is deliberately not passed to the kernel.

    weight_args = (
        emb_p,
        params["w_ih_f"], params["w_hh_f"], b_gi_f, b_hn_f,
        params["w_ih_b"], b_gi_b, b_hn_b,
        params["w_fc"], params["b_fc"],
    )

    def resident_spec(arr):
        nd = arr.ndim
        return pl.BlockSpec(arr.shape, lambda i, _nd=nd: (0,) * _nd)

    unroll = 1
    for u in (16, 8, 4, 2):
        if time_block % u == 0:
            unroll = u
            break

    kernel = functools.partial(
        gru_classifier_kernel, time_block=time_block, padded_batch=Bp,
        hidden=H, vocab_padded=Vp, unroll=unroll)

    # Explicit VMEM budget (matters on v7x's 64 MiB physical / 32 MiB default).
    def nbytes(a):
        return int(a.size) * a.dtype.itemsize
    vmem_est = (2 * sum(nbytes(w) for w in weight_args)        # resident (2x headroom)
                + 4 * time_block * Bp * 4                      # double-buffered ids
                + time_block * Bp * 3 * H * 4                  # gi scratch
                + Bp * H * 4 + 2 * Bp * C * 4)                 # h carry + out
    vmem_limit = int(min(48 << 20, max(16 << 20, 2 * vmem_est)))

    probs_padded = pl.pallas_call(
        kernel,
        out_shape=jax.ShapeDtypeStruct((Bp, C), jnp.float32),
        grid=(T // time_block,),
        in_specs=[pl.BlockSpec((time_block * Bp, 1), lambda i: (i, 0))]
                 + [resident_spec(w) for w in weight_args],
        out_specs=pl.BlockSpec((Bp, C), lambda i: (0, 0)),
        scratch_shapes=[pltpu.VMEM((Bp, H), jnp.float32),
                        pltpu.VMEM((time_block * Bp, 3 * H), jnp.float32)],
        compiler_params=pltpu.CompilerParams(
            dimension_semantics=("arbitrary",),     # time axis is a sequential carry
            vmem_limit_bytes=vmem_limit),
    )(ids2d, *weight_args)

    # TODO(synk): for large B on v7x, add a "parallel" batch-block grid axis so both
    # TensorCores are used; the GRU recurrence is embarrassingly parallel over batch.
    return probs_padded[:B], None, None


def reference_forward(text, params):
    """Pure-JAX reference: full bidirectional GRU, fc(gru_out[-1]), softmax."""
    emb_w = params["embedding"]
    x = jnp.take(emb_w, text, axis=0).astype(jnp.float32)       # (T, B, E)
    T, B, _ = x.shape
    H = params["w_hh_f"].shape[0]
    hp = lax.Precision.HIGHEST

    def cell(x_t, h, wih, whh, bih, bhh):
        gi = jnp.dot(x_t, wih, precision=hp) + bih
        gh = jnp.dot(h, whh, precision=hp) + bhh
        r = jax.nn.sigmoid(gi[:, :H] + gh[:, :H])
        z = jax.nn.sigmoid(gi[:, H:2 * H] + gh[:, H:2 * H])
        n = jnp.tanh(gi[:, 2 * H:] + r * gh[:, 2 * H:])
        return (1.0 - z) * n + z * h

    h_f = jnp.zeros((B, H), jnp.float32)
    for t in range(T):
        h_f = cell(x[t], h_f, params["w_ih_f"], params["w_hh_f"],
                   params["b_ih_f"], params["b_hh_f"])

    h_b = jnp.zeros((B, H), jnp.float32)
    out_b_at_last = None
    for t in range(T - 1, -1, -1):
        h_b = cell(x[t], h_b, params["w_ih_b"], params["w_hh_b"],
                   params["b_ih_b"], params["b_hh_b"])
        if t == T - 1:
            out_b_at_last = h_b              # reverse-direction output at time T-1

    feat = jnp.concatenate([h_f, out_b_at_last], axis=1)
    logits = jnp.dot(feat, params["w_fc"], precision=hp) + params["b_fc"]
    return jax.nn.softmax(logits, axis=1)


def init_params(key, vocab_size, embed_dim, hidden_dim, num_class):
    ks = jax.random.split(key, 12)
    s_g = 1.0 / jnp.sqrt(hidden_dim)        # PyTorch GRU init scale
    s_f = 1.0 / jnp.sqrt(2 * hidden_dim)    # PyTorch Linear init scale

    def u(k, shape, s):
        return jax.random.uniform(k, shape, jnp.float32, -s, s)

    return {
        "embedding": jax.random.normal(ks[0], (vocab_size, embed_dim), jnp.float32),
        # weights stored transposed relative to PyTorch so matmuls are x @ W;
        # gate stacking order along the last axis is [r | z | n].
        "w_ih_f": u(ks[1], (embed_dim, 3 * hidden_dim), s_g),
        "w_hh_f": u(ks[2], (hidden_dim, 3 * hidden_dim), s_g),
        "b_ih_f": u(ks[3], (1, 3 * hidden_dim), s_g),
        "b_hh_f": u(ks[4], (1, 3 * hidden_dim), s_g),
        "w_ih_b": u(ks[5], (embed_dim, 3 * hidden_dim), s_g),
        "w_hh_b": u(ks[6], (hidden_dim, 3 * hidden_dim), s_g),
        "b_ih_b": u(ks[7], (1, 3 * hidden_dim), s_g),
        "b_hh_b": u(ks[8], (1, 3 * hidden_dim), s_g),
        "w_fc":   u(ks[9], (2 * hidden_dim, num_class), s_f),
        "b_fc":   u(ks[10], (1, num_class), s_f),
    }


if __name__ == "__main__":
    VOCAB_SIZE = 50
    EMBEDDING_DIMENSION = 32
    ENCODER_HIDDEN_DIMENSION = 32
    NUM_CLASS = 4
    SEQ_LEN = 8
    BATCH = 2

    key = jax.random.PRNGKey(0)
    k_param, k_text = jax.random.split(key)
    params = init_params(k_param, VOCAB_SIZE, EMBEDDING_DIMENSION,
                         ENCODER_HIDDEN_DIMENSION, NUM_CLASS)

    text = jax.random.randint(k_text, (SEQ_LEN, BATCH), 0, VOCAB_SIZE,
                              dtype=jnp.int32)

    probs, _, _ = user_classification_forward(text, params)
    probs = jax.block_until_ready(probs)

    ref = reference_forward(text, params)

    assert probs.shape == (BATCH, NUM_CLASS)
    assert bool(jnp.all(jnp.isfinite(probs)))
    assert bool(jnp.allclose(jnp.sum(probs, axis=1), 1.0, atol=1e-3))
    assert bool(jnp.allclose(probs, ref, atol=2e-3, rtol=2e-3))
    print("KERNEL_OK")
</pallas_src>

<mosaic_0001>
module attributes {stable_mosaic.version = 11 : i64} {
  func.func @gru_classifier_kernel(%arg0: i32, %arg1: memref<64x1xi32, #tpu.memory_space<vmem>>, %arg2: memref<56x32xf32, #tpu.memory_space<vmem>>, %arg3: memref<32x96xf32, #tpu.memory_space<vmem>>, %arg4: memref<32x96xf32, #tpu.memory_space<vmem>>, %arg5: memref<1x96xf32, #tpu.memory_space<vmem>>, %arg6: memref<1x32xf32, #tpu.memory_space<vmem>>, %arg7: memref<32x96xf32, #tpu.memory_space<vmem>>, %arg8: memref<1x96xf32, #tpu.memory_space<vmem>>, %arg9: memref<1x32xf32, #tpu.memory_space<vmem>>, %arg10: memref<64x4xf32, #tpu.memory_space<vmem>>, %arg11: memref<1x4xf32, #tpu.memory_space<vmem>>, %arg12: memref<8x4xf32, #tpu.memory_space<vmem>>, %arg13: memref<8x32xf32, #tpu.memory_space<vmem>>, %arg14: memref<64x96xf32, #tpu.memory_space<vmem>>) attributes {dimension_semantics = [#tpu.dimension_semantics<arbitrary>], iteration_bounds = array<i64: 1>, scalar_prefetch = 0 : i64, scratch_operands = 2 : i64, tpu.core_type = #tpu.core_type<tc>, window_params = [{transform_indices = @transform_0, window_bounds = array<i64: 64, 1>}, {pipeline_mode = #tpu.pipeline_mode<synchronous>, transform_indices = @transform_1, window_bounds = array<i64: 56, 32>}, {pipeline_mode = #tpu.pipeline_mode<synchronous>, transform_indices = @transform_2, window_bounds = array<i64: 32, 96>}, {pipeline_mode = #tpu.pipeline_mode<synchronous>, transform_indices = @transform_3, window_bounds = array<i64: 32, 96>}, {pipeline_mode = #tpu.pipeline_mode<synchronous>, transform_indices = @transform_4, window_bounds = array<i64: 1, 96>}, {pipeline_mode = #tpu.pipeline_mode<synchronous>, transform_indices = @transform_5, window_bounds = array<i64: 1, 32>}, {pipeline_mode = #tpu.pipeline_mode<synchronous>, transform_indices = @transform_6, window_bounds = array<i64: 32, 96>}, {pipeline_mode = #tpu.pipeline_mode<synchronous>, transform_indices = @transform_7, window_bounds = array<i64: 1, 96>}, {pipeline_mode = #tpu.pipeline_mode<synchronous>, transform_indices = @transform_8, window_bounds = array<i64: 1, 32>}, {pipeline_mode = #tpu.pipeline_mode<synchronous>, transform_indices = @transform_9, window_bounds = array<i64: 64, 4>}, {pipeline_mode = #tpu.pipeline_mode<synchronous>, transform_indices = @transform_10, window_bounds = array<i64: 1, 4>}, {pipeline_mode = #tpu.pipeline_mode<synchronous>, transform_indices = @transform_11, window_bounds = array<i64: 8, 4>}]} {
    %c0_i32 = arith.constant 0 : i32
    %0 = arith.cmpi eq, %arg0, %c0_i32 : i32
    %1 = arith.extui %0 : i1 to i32
    %c0_i32_0 = arith.constant 0 : i32
    %2 = arith.cmpi ne, %1, %c0_i32_0 : i32
    scf.if %2 {
      %cst_64 = arith.constant 0.000000e+00 : f32
      %235 = vector.broadcast %cst_64 : f32 to vector<8x32xf32>
      %c0_65 = arith.constant 0 : index
      %c0_66 = arith.constant 0 : index
      %236 = vector.load %arg13[%c0_65, %c0_66] : memref<8x32xf32, #tpu.memory_space<vmem>>, vector<8x32xf32>
      tpu.vector_store %arg13[%c0_65, %c0_66], %235 {strides = array<i32>} : memref<8x32xf32, #tpu.memory_space<vmem>>, vector<8x32xf32>,
    } else {
    }
    %c0 = arith.constant 0 : index
    %c0_1 = arith.constant 0 : index
    %3 = vector.load %arg1[%c0, %c0_1] : memref<64x1xi32, #tpu.memory_space<vmem>>, vector<64x1xi32>
    %4 = tpu.iota {dimensions = array<i32: 1>} : vector<64x56xi32>
    %5 = vector.broadcast %3 : vector<64x1xi32> to vector<64x56xi32>
    %6 = arith.cmpi eq, %5, %4 : vector<64x56xi32>
    %cst = arith.constant 1.000000e+00 : f32
    %cst_2 = arith.constant 0.000000e+00 : f32
    %7 = vector.broadcast %cst : f32 to vector<64x56xf32>
    %8 = vector.broadcast %cst_2 : f32 to vector<64x56xf32>
    %9 = arith.select %6, %7, %8 : vector<64x56xi1>, vector<64x56xf32>
    %c0_3 = arith.constant 0 : index
    %c0_4 = arith.constant 0 : index
    %10 = vector.load %arg2[%c0_3, %c0_4] : memref<56x32xf32, #tpu.memory_space<vmem>>, vector<56x32xf32>
    %cst_5 = arith.constant dense<0.000000e+00> : vector<64x32xf32>
    %11 = tpu.matmul %9, %10, %cst_5 {dimension_numbers = #tpu.dot_dimension_numbers<[1], [0], [0], [1], [0, 0, 1, 1], [], []>} : vector<64x56xf32>, vector<56x32xf32>, vector<64x32xf32> -> vector<64x32xf32>
    %c0_6 = arith.constant 0 : index
    %c0_7 = arith.constant 0 : index
    %12 = vector.load %arg3[%c0_6, %c0_7] : memref<32x96xf32, #tpu.memory_space<vmem>>, vector<32x96xf32>
    %cst_8 = arith.constant dense<0.000000e+00> : vector<64x96xf32>
    %13 = tpu.matmul %11, %12, %cst_8 {dimension_numbers = #tpu.dot_dimension_numbers<[1], [0], [0], [1], [0, 0, 1, 1], [], []>} : vector<64x32xf32>, vector<32x96xf32>, vector<64x96xf32> -> vector<64x96xf32>
    %c0_9 = arith.constant 0 : index
    %c0_10 = arith.constant 0 : index
    %14 = vector.load %arg5[%c0_9, %c0_10] : memref<1x96xf32, #tpu.memory_space<vmem>>, vector<1x96xf32>
    %15 = vector.broadcast %14 : vector<1x96xf32> to vector<64x96xf32>
    %16 = arith.addf %13, %15 : vector<64x96xf32>
    %c0_11 = arith.constant 0 : index
    %c0_12 = arith.constant 0 : index
    %17 = vector.load %arg14[%c0_11, %c0_12] : memref<64x96xf32, #tpu.memory_space<vmem>>, vector<64x96xf32>
    tpu.vector_store %arg14[%c0_11, %c0_12], %16 {strides = array<i32>} : memref<64x96xf32, #tpu.memory_space<vmem>>, vector<64x96xf32>,
    %c0_13 = arith.constant 0 : index
    %c0_14 = arith.constant 0 : index
    %18 = vector.load %arg4[%c0_13, %c0_14] : memref<32x96xf32, #tpu.memory_space<vmem>>, vector<32x96xf32>
    %c0_15 = arith.constant 0 : index
    %c0_16 = arith.constant 0 : index
    %19 = vector.load %arg6[%c0_15, %c0_16] : memref<1x32xf32, #tpu.memory_space<vmem>>, vector<1x32xf32>
    %20 = vector.shape_cast %19 : vector<1x32xf32> to vector<1x32xf32>
    %21 = vector.broadcast %20 : vector<1x32xf32> to vector<8x32xf32>
    %c0_17 = arith.constant 0 : index
    %c0_18 = arith.constant 0 : index
    %22 = vector.load %arg13[%c0_17, %c0_18] : memref<8x32xf32, #tpu.memory_space<vmem>>, vector<8x32xf32>
    %c0_i32_19 = arith.constant 0 : i32
    %c8_i32 = arith.constant 8 : i32
    %23 = arith.muli %c0_i32_19, %c8_i32 : i32
    %24 = tpu.assume_multiple %23, 8 : i32
    %25 = arith.index_cast %24 : i32 to index
    %c0_20 = arith.constant 0 : index
    %26 = vector.load %arg14[%25, %c0_20] : memref<64x96xf32, #tpu.memory_space<vmem>>, vector<8x96xf32>
    %cst_21 = arith.constant dense<0.000000e+00> : vector<8x96xf32>
    %27 = tpu.matmul %22, %18, %cst_21 {dimension_numbers = #tpu.dot_dimension_numbers<[1], [0], [0], [1], [0, 0, 1, 1], [], []>} : vector<8x32xf32>, vector<32x96xf32>, vector<8x96xf32> -> vector<8x96xf32>
    %28 = vector.extract_strided_slice %26 {offsets = [0, 0], sizes = [8, 64], strides = [1, 1]} : vector<8x96xf32> to vector<8x64xf32>
    %29 = vector.extract_strided_slice %27 {offsets = [0, 0], sizes = [8, 64], strides = [1, 1]} : vector<8x96xf32> to vector<8x64xf32>
    %30 = arith.addf %28, %29 : vector<8x64xf32>
    %31 = arith.negf %30 : vector<8x64xf32>
    %32 = math.exp %31 : vector<8x64xf32>
    %cst_22 = arith.constant 1.000000e+00 : f32
    %33 = vector.broadcast %cst_22 : f32 to vector<8x64xf32>
    %34 = arith.addf %33, %32 : vector<8x64xf32>
    %35 = arith.divf %33, %34 : vector<8x64xf32>
    %36 = vector.extract_strided_slice %35 {offsets = [0, 0], sizes = [8, 32], strides = [1, 1]} : vector<8x64xf32> to vector<8x32xf32>
    %37 = vector.extract_strided_slice %35 {offsets = [0, 32], sizes = [8, 32], strides = [1, 1]} : vector<8x64xf32> to vector<8x32xf32>
    %38 = vector.extract_strided_slice %26 {offsets = [0, 64], sizes = [8, 32], strides = [1, 1]} : vector<8x96xf32> to vector<8x32xf32>
    %39 = vector.extract_strided_slice %27 {offsets = [0, 64], sizes = [8, 32], strides = [1, 1]} : vector<8x96xf32> to vector<8x32xf32>
    %40 = arith.addf %39, %21 : vector<8x32xf32>
    %41 = arith.mulf %36, %40 : vector<8x32xf32>
    %42 = arith.addf %38, %41 : vector<8x32xf32>
    %43 = math.tanh %42 : vector<8x32xf32>
    %cst_23 = arith.constant 1.000000e+00 : f32
    %44 = vector.broadcast %cst_23 : f32 to vector<8x32xf32>
    %45 = arith.subf %44, %37 : vector<8x32xf32>
    %46 = arith.mulf %45, %43 : vector<8x32xf32>
    %47 = arith.mulf %37, %22 : vector<8x32xf32>
    %48 = arith.addf %46, %47 : vector<8x32xf32>
    %c1_i32 = arith.constant 1 : i32
    %c8_i32_24 = arith.constant 8 : i32
    %49 = arith.muli %c1_i32, %c8_i32_24 : i32
    %50 = tpu.assume_multiple %49, 8 : i32
    %51 = arith.index_cast %50 : i32 to index
    %c0_25 = arith.constant 0 : index
    %52 = vector.load %arg14[%51, %c0_25] : memref<64x96xf32, #tpu.memory_space<vmem>>, vector<8x96xf32>
    %cst_26 = arith.constant dense<0.000000e+00> : vector<8x96xf32>
    %53 = tpu.matmul %48, %18, %cst_26 {dimension_numbers = #tpu.dot_dimension_numbers<[1], [0], [0], [1], [0, 0, 1, 1], [], []>} : vector<8x32xf32>, vector<32x96xf32>, vector<8x96xf32> -> vector<8x96xf32>
    %54 = vector.extract_strided_slice %52 {offsets = [0, 0], sizes = [8, 64], strides = [1, 1]} : vector<8x96xf32> to vector<8x64xf32>
    %55 = vector.extract_strided_slice %53 {offsets = [0, 0], sizes = [8, 64], strides = [1, 1]} : vector<8x96xf32> to vector<8x64xf32>
    %56 = arith.addf %54, %55 : vector<8x64xf32>
    %57 = arith.negf %56 : vector<8x64xf32>
    %58 = math.exp %57 : vector<8x64xf32>
    %cst_27 = arith.constant 1.000000e+00 : f32
    %59 = vector.broadcast %cst_27 : f32 to vector<8x64xf32>
    %60 = arith.addf %59, %58 : vector<8x64xf32>
    %61 = arith.divf %59, %60 : vector<8x64xf32>
    %62 = vector.extract_strided_slice %61 {offsets = [0, 0], sizes = [8, 32], strides = [1, 1]} : vector<8x64xf32> to vector<8x32xf32>
    %63 = vector.extract_strided_slice %61 {offsets = [0, 32], sizes = [8, 32], strides = [1, 1]} : vector<8x64xf32> to vector<8x32xf32>
    %64 = vector.extract_strided_slice %52 {offsets = [0, 64], sizes = [8, 32], strides = [1, 1]} : vector<8x96xf32> to vector<8x32xf32>
    %65 = vector.extract_strided_slice %53 {offsets = [0, 64], sizes = [8, 32], strides = [1, 1]} : vector<8x96xf32> to vector<8x32xf32>
    %66 = arith.addf %65, %21 : vector<8x32xf32>
    %67 = arith.mulf %62, %66 : vector<8x32xf32>
    %68 = arith.addf %64, %67 : vector<8x32xf32>
    %69 = math.tanh %68 : vector<8x32xf32>
    %cst_28 = arith.constant 1.000000e+00 : f32
    %70 = vector.broadcast %cst_28 : f32 to vector<8x32xf32>
    %71 = arith.subf %70, %63 : vector<8x32xf32>
    %72 = arith.mulf %71, %69 : vector<8x32xf32>
    %73 = arith.mulf %63, %48 : vector<8x32xf32>
    %74 = arith.addf %72, %73 : vector<8x32xf32>
    %c2_i32 = arith.constant 2 : i32
    %c8_i32_29 = arith.constant 8 : i32
    %75 = arith.muli %c2_i32, %c8_i32_29 : i32
    %76 = tpu.assume_multiple %75, 8 : i32
    %77 = arith.index_cast %76 : i32 to index
    %c0_30 = arith.constant 0 : index
    %78 = vector.load %arg14[%77, %c0_30] : memref<64x96xf32, #tpu.memory_space<vmem>>, vector<8x96xf32>
    %cst_31 = arith.constant dense<0.000000e+00> : vector<8x96xf32>
    %79 = tpu.matmul %74, %18, %cst_31 {dimension_numbers = #tpu.dot_dimension_numbers<[1], [0], [0], [1], [0, 0, 1, 1], [], []>} : vector<8x32xf32>, vector<32x96xf32>, vector<8x96xf32> -> vector<8x96xf32>
    %80 = vector.extract_strided_slice %78 {offsets = [0, 0], sizes = [8, 64], strides = [1, 1]} : vector<8x96xf32> to vector<8x64xf32>
    %81 = vector.extract_strided_slice %79 {offsets = [0, 0], sizes = [8, 64], strides = [1, 1]} : vector<8x96xf32> to vector<8x64xf32>
    %82 = arith.addf %80, %81 : vector<8x64xf32>
    %83 = arith.negf %82 : vector<8x64xf32>
    %84 = math.exp %83 : vector<8x64xf32>
    %cst_32 = arith.constant 1.000000e+00 : f32
    %85 = vector.broadcast %cst_32 : f32 to vector<8x64xf32>
    %86 = arith.addf %85, %84 : vector<8x64xf32>
    %87 = arith.divf %85, %86 : vector<8x64xf32>
    %88 = vector.extract_strided_slice %87 {offsets = [0, 0], sizes = [8, 32], strides = [1, 1]} : vector<8x64xf32> to vector<8x32xf32>
    %89 = vector.extract_strided_slice %87 {offsets = [0, 32], sizes = [8, 32], strides = [1, 1]} : vector<8x64xf32> to vector<8x32xf32>
    %90 = vector.extract_strided_slice %78 {offsets = [0, 64], sizes = [8, 32], strides = [1, 1]} : vector<8x96xf32> to vector<8x32xf32>
    %91 = vector.extract_strided_slice %79 {offsets = [0, 64], sizes = [8, 32], strides = [1, 1]} : vector<8x96xf32> to vector<8x32xf32>
    %92 = arith.addf %91, %21 : vector<8x32xf32>
    %93 = arith.mulf %88, %92 : vector<8x32xf32>
    %94 = arith.addf %90, %93 : vector<8x32xf32>
    %95 = math.tanh %94 : vector<8x32xf32>
    %cst_33 = arith.constant 1.000000e+00 : f32
    %96 = vector.broadcast %cst_33 : f32 to vector<8x32xf32>
    %97 = arith.subf %96, %89 : vector<8x32xf32>
    %98 = arith.mulf %97, %95 : vector<8x32xf32>
    %99 = arith.mulf %89, %74 : vector<8x32xf32>
    %100 = arith.addf %98, %99 : vector<8x32xf32>
    %c3_i32 = arith.constant 3 : i32
    %c8_i32_34 = arith.constant 8 : i32
    %101 = arith.muli %c3_i32, %c8_i32_34 : i32
    %102 = tpu.assume_multiple %101, 8 : i32
    %103 = arith.index_cast %102 : i32 to index
    %c0_35 = arith.constant 0 : index
    %104 = vector.load %arg14[%103, %c0_35] : memref<64x96xf32, #tpu.memory_space<vmem>>, vector<8x96xf32>
    %cst_36 = arith.constant dense<0.000000e+00> : vector<8x96xf32>
    %105 = tpu.matmul %100, %18, %cst_36 {dimension_numbers = #tpu.dot_dimension_numbers<[1], [0], [0], [1], [0, 0, 1, 1], [], []>} : vector<8x32xf32>, vector<32x96xf32>, vector<8x96xf32> -> vector<8x96xf32>
    %106 = vector.extract_strided_slice %104 {offsets = [0, 0], sizes = [8, 64], strides = [1, 1]} : vector<8x96xf32> to vector<8x64xf32>
    %107 = vector.extract_strided_slice %105 {offsets = [0, 0], sizes = [8, 64], strides = [1, 1]} : vector<8x96xf32> to vector<8x64xf32>
    %108 = arith.addf %106, %107 : vector<8x64xf32>
    %109 = arith.negf %108 : vector<8x64xf32>
    %110 = math.exp %109 : vector<8x64xf32>
    %cst_37 = arith.constant 1.000000e+00 : f32
    %111 = vector.broadcast %cst_37 : f32 to vector<8x64xf32>
    %112 = arith.addf %111, %110 : vector<8x64xf32>
    %113 = arith.divf %111, %112 : vector<8x64xf32>
    %114 = vector.extract_strided_slice %113 {offsets = [0, 0], sizes = [8, 32], strides = [1, 1]} : vector<8x64xf32> to vector<8x32xf32>
    %115 = vector.extract_strided_slice %113 {offsets = [0, 32], sizes = [8, 32], strides = [1, 1]} : vector<8x64xf32> to vector<8x32xf32>
    %116 = vector.extract_strided_slice %104 {offsets = [0, 64], sizes = [8, 32], strides = [1, 1]} : vector<8x96xf32> to vector<8x32xf32>
    %117 = vector.extract_strided_slice %105 {offsets = [0, 64], sizes = [8, 32], strides = [1, 1]} : vector<8x96xf32> to vector<8x32xf32>
    %118 = arith.addf %117, %21 : vector<8x32xf32>
    %119 = arith.mulf %114, %118 : vector<8x32xf32>
    %120 = arith.addf %116, %119 : vector<8x32xf32>
    %121 = math.tanh %120 : vector<8x32xf32>
    %cst_38 = arith.constant 1.000000e+00 : f32
    %122 = vector.broadcast %cst_38 : f32 to vector<8x32xf32>
    %123 = arith.subf %122, %115 : vector<8x32xf32>
    %124 = arith.mulf %123, %121 : vector<8x32xf32>
    %125 = arith.mulf %115, %100 : vector<8x32xf32>
    %126 = arith.addf %124, %125 : vector<8x32xf32>
    %c4_i32 = arith.constant 4 : i32
    %c8_i32_39 = arith.constant 8 : i32
    %127 = arith.muli %c4_i32, %c8_i32_39 : i32
    %128 = tpu.assume_multiple %127, 8 : i32
    %129 = arith.index_cast %128 : i32 to index
    %c0_40 = arith.constant 0 : index
    %130 = vector.load %arg14[%129, %c0_40] : memref<64x96xf32, #tpu.memory_space<vmem>>, vector<8x96xf32>
    %cst_41 = arith.constant dense<0.000000e+00> : vector<8x96xf32>
    %131 = tpu.matmul %126, %18, %cst_41 {dimension_numbers = #tpu.dot_dimension_numbers<[1], [0], [0], [1], [0, 0, 1, 1], [], []>} : vector<8x32xf32>, vector<32x96xf32>, vector<8x96xf32> -> vector<8x96xf32>
    %132 = vector.extract_strided_slice %130 {offsets = [0, 0], sizes = [8, 64], strides = [1, 1]} : vector<8x96xf32> to vector<8x64xf32>
    %133 = vector.extract_strided_slice %131 {offsets = [0, 0], sizes = [8, 64], strides = [1, 1]} : vector<8x96xf32> to vector<8x64xf32>
    %134 = arith.addf %132, %133 : vector<8x64xf32>
    %135 = arith.negf %134 : vector<8x64xf32>
    %136 = math.exp %135 : vector<8x64xf32>
    %cst_42 = arith.constant 1.000000e+00 : f32
    %137 = vector.broadcast %cst_42 : f32 to vector<8x64xf32>
    %138 = arith.addf %137, %136 : vector<8x64xf32>
    %139 = arith.divf %137, %138 : vector<8x64xf32>
    %140 = vector.extract_strided_slice %139 {offsets = [0, 0], sizes = [8, 32], strides = [1, 1]} : vector<8x64xf32> to vector<8x32xf32>
    %141 = vector.extract_strided_slice %139 {offsets = [0, 32], sizes = [8, 32], strides = [1, 1]} : vector<8x64xf32> to vector<8x32xf32>
    %142 = vector.extract_strided_slice %130 {offsets = [0, 64], sizes = [8, 32], strides = [1, 1]} : vector<8x96xf32> to vector<8x32xf32>
    %143 = vector.extract_strided_slice %131 {offsets = [0, 64], sizes = [8, 32], strides = [1, 1]} : vector<8x96xf32> to vector<8x32xf32>
    %144 = arith.addf %143, %21 : vector<8x32xf32>
    %145 = arith.mulf %140, %144 : vector<8x32xf32>
    %146 = arith.addf %142, %145 : vector<8x32xf32>
    %147 = math.tanh %146 : vector<8x32xf32>
    %cst_43 = arith.constant 1.000000e+00 : f32
    %148 = vector.broadcast %cst_43 : f32 to vector<8x32xf32>
    %149 = arith.subf %148, %141 : vector<8x32xf32>
    %150 = arith.mulf %149, %147 : vector<8x32xf32>
    %151 = arith.mulf %141, %126 : vector<8x32xf32>
    %152 = arith.addf %150, %151 : vector<8x32xf32>
    %c5_i32 = arith.constant 5 : i32
    %c8_i32_44 = arith.constant 8 : i32
    %153 = arith.muli %c5_i32, %c8_i32_44 : i32
    %154 = tpu.assume_multiple %153, 8 : i32
    %155 = arith.index_cast %154 : i32 to index
    %c0_45 = arith.constant 0 : index
    %156 = vector.load %arg14[%155, %c0_45] : memref<64x96xf32, #tpu.memory_space<vmem>>, vector<8x96xf32>
    %cst_46 = arith.constant dense<0.000000e+00> : vector<8x96xf32>
    %157 = tpu.matmul %152, %18, %cst_46 {dimension_numbers = #tpu.dot_dimension_numbers<[1], [0], [0], [1], [0, 0, 1, 1], [], []>} : vector<8x32xf32>, vector<32x96xf32>, vector<8x96xf32> -> vector<8x96xf32>
    %158 = vector.extract_strided_slice %156 {offsets = [0, 0], sizes = [8, 64], strides = [1, 1]} : vector<8x96xf32> to vector<8x64xf32>
    %159 = vector.extract_strided_slice %157 {offsets = [0, 0], sizes = [8, 64], strides = [1, 1]} : vector<8x96xf32> to vector<8x64xf32>
    %160 = arith.addf %158, %159 : vector<8x64xf32>
    %161 = arith.negf %160 : vector<8x64xf32>
    %162 = math.exp %161 : vector<8x64xf32>
    %cst_47 = arith.constant 1.000000e+00 : f32
    %163 = vector.broadcast %cst_47 : f32 to vector<8x64xf32>
    %164 = arith.addf %163, %162 : vector<8x64xf32>
    %165 = arith.divf %163, %164 : vector<8x64xf32>
    %166 = vector.extract_strided_slice %165 {offsets = [0, 0], sizes = [8, 32], strides = [1, 1]} : vector<8x64xf32> to vector<8x32xf32>
    %167 = vector.extract_strided_slice %165 {offsets = [0, 32], sizes = [8, 32], strides = [1, 1]} : vector<8x64xf32> to vector<8x32xf32>
    %168 = vector.extract_strided_slice %156 {offsets = [0, 64], sizes = [8, 32], strides = [1, 1]} : vector<8x96xf32> to vector<8x32xf32>
    %169 = vector.extract_strided_slice %157 {offsets = [0, 64], sizes = [8, 32], strides = [1, 1]} : vector<8x96xf32> to vector<8x32xf32>
    %170 = arith.addf %169, %21 : vector<8x32xf32>
    %171 = arith.mulf %166, %170 : vector<8x32xf32>
    %172 = arith.addf %168, %171 : vector<8x32xf32>
    %173 = math.tanh %172 : vector<8x32xf32>
    %cst_48 = arith.constant 1.000000e+00 : f32
    %174 = vector.broadcast %cst_48 : f32 to vector<8x32xf32>
    %175 = arith.subf %174, %167 : vector<8x32xf32>
    %176 = arith.mulf %175, %173 : vector<8x32xf32>
    %177 = arith.mulf %167, %152 : vector<8x32xf32>
    %178 = arith.addf %176, %177 : vector<8x32xf32>
    %c6_i32 = arith.constant 6 : i32
    %c8_i32_49 = arith.constant 8 : i32
    %179 = arith.muli %c6_i32, %c8_i32_49 : i32
    %180 = tpu.assume_multiple %179, 8 : i32
    %181 = arith.index_cast %180 : i32 to index
    %c0_50 = arith.constant 0 : index
    %182 = vector.load %arg14[%181, %c0_50] : memref<64x96xf32, #tpu.memory_space<vmem>>, vector<8x96xf32>
    %cst_51 = arith.constant dense<0.000000e+00> : vector<8x96xf32>
    %183 = tpu.matmul %178, %18, %cst_51 {dimension_numbers = #tpu.dot_dimension_numbers<[1], [0], [0], [1], [0, 0, 1, 1], [], []>} : vector<8x32xf32>, vector<32x96xf32>, vector<8x96xf32> -> vector<8x96xf32>
    %184 = vector.extract_strided_slice %182 {offsets = [0, 0], sizes = [8, 64], strides = [1, 1]} : vector<8x96xf32> to vector<8x64xf32>
    %185 = vector.extract_strided_slice %183 {offsets = [0, 0], sizes = [8, 64], strides = [1, 1]} : vector<8x96xf32> to vector<8x64xf32>
    %186 = arith.addf %184, %185 : vector<8x64xf32>
    %187 = arith.negf %186 : vector<8x64xf32>
    %188 = math.exp %187 : vector<8x64xf32>
    %cst_52 = arith.constant 1.000000e+00 : f32
    %189 = vector.broadcast %cst_52 : f32 to vector<8x64xf32>
    %190 = arith.addf %189, %188 : vector<8x64xf32>
    %191 = arith.divf %189, %190 : vector<8x64xf32>
    %192 = vector.extract_strided_slice %191 {offsets = [0, 0], sizes = [8, 32], strides = [1, 1]} : vector<8x64xf32> to vector<8x32xf32>
    %193 = vector.extract_strided_slice %191 {offsets = [0, 32], sizes = [8, 32], strides = [1, 1]} : vector<8x64xf32> to vector<8x32xf32>
    %194 = vector.extract_strided_slice %182 {offsets = [0, 64], sizes = [8, 32], strides = [1, 1]} : vector<8x96xf32> to vector<8x32xf32>
    %195 = vector.extract_strided_slice %183 {offsets = [0, 64], sizes = [8, 32], strides = [1, 1]} : vector<8x96xf32> to vector<8x32xf32>
    %196 = arith.addf %195, %21 : vector<8x32xf32>
    %197 = arith.mulf %192, %196 : vector<8x32xf32>
    %198 = arith.addf %194, %197 : vector<8x32xf32>
    %199 = math.tanh %198 : vector<8x32xf32>
    %cst_53 = arith.constant 1.000000e+00 : f32
    %200 = vector.broadcast %cst_53 : f32 to vector<8x32xf32>
    %201 = arith.subf %200, %193 : vector<8x32xf32>
    %202 = arith.mulf %201, %199 : vector<8x32xf32>
    %203 = arith.mulf %193, %178 : vector<8x32xf32>
    %204 = arith.addf %202, %203 : vector<8x32xf32>
    %c7_i32 = arith.constant 7 : i32
    %c8_i32_54 = arith.constant 8 : i32
    %205 = arith.muli %c7_i32, %c8_i32_54 : i32
    %206 = tpu.assume_multiple %205, 8 : i32
    %207 = arith.index_cast %206 : i32 to index
    %c0_55 = arith.constant 0 : index
    %208 = vector.load %arg14[%207, %c0_55] : memref<64x96xf32, #tpu.memory_space<vmem>>, vector<8x96xf32>
    %cst_56 = arith.constant dense<0.000000e+00> : vector<8x96xf32>
    %209 = tpu.matmul %204, %18, %cst_56 {dimension_numbers = #tpu.dot_dimension_numbers<[1], [0], [0], [1], [0, 0, 1, 1], [], []>} : vector<8x32xf32>, vector<32x96xf32>, vector<8x96xf32> -> vector<8x96xf32>
    %210 = vector.extract_strided_slice %208 {offsets = [0, 0], sizes = [8, 64], strides = [1, 1]} : vector<8x96xf32> to vector<8x64xf32>
    %211 = vector.extract_strided_slice %209 {offsets = [0, 0], sizes = [8, 64], strides = [1, 1]} : vector<8x96xf32> to vector<8x64xf32>
    %212 = arith.addf %210, %211 : vector<8x64xf32>
    %213 = arith.negf %212 : vector<8x64xf32>
    %214 = math.exp %213 : vector<8x64xf32>
    %cst_57 = arith.constant 1.000000e+00 : f32
    %215 = vector.broadcast %cst_57 : f32 to vector<8x64xf32>
    %216 = arith.addf %215, %214 : vector<8x64xf32>
    %217 = arith.divf %215, %216 : vector<8x64xf32>
    %218 = vector.extract_strided_slice %217 {offsets = [0, 0], sizes = [8, 32], strides = [1, 1]} : vector<8x64xf32> to vector<8x32xf32>
    %219 = vector.extract_strided_slice %217 {offsets = [0, 32], sizes = [8, 32], strides = [1, 1]} : vector<8x64xf32> to vector<8x32xf32>
    %220 = vector.extract_strided_slice %208 {offsets = [0, 64], sizes = [8, 32], strides = [1, 1]} : vector<8x96xf32> to vector<8x32xf32>
    %221 = vector.extract_strided_slice %209 {offsets = [0, 64], sizes = [8, 32], strides = [1, 1]} : vector<8x96xf32> to vector<8x32xf32>
    %222 = arith.addf %221, %21 : vector<8x32xf32>
    %223 = arith.mulf %218, %222 : vector<8x32xf32>
    %224 = arith.addf %220, %223 : vector<8x32xf32>
    %225 = math.tanh %224 : vector<8x32xf32>
    %cst_58 = arith.constant 1.000000e+00 : f32
    %226 = vector.broadcast %cst_58 : f32 to vector<8x32xf32>
    %227 = arith.subf %226, %219 : vector<8x32xf32>
    %228 = arith.mulf %227, %225 : vector<8x32xf32>
    %229 = arith.mulf %219, %204 : vector<8x32xf32>
    %230 = arith.addf %228, %229 : vector<8x32xf32>
    %c8_i32_59 = arith.constant 8 : i32
    %c0_60 = arith.constant 0 : index
    %c0_61 = arith.constant 0 : index
    %231 = vector.load %arg13[%c0_60, %c0_61] : memref<8x32xf32, #tpu.memory_space<vmem>>, vector<8x32xf32>
    tpu.vector_store %arg13[%c0_60, %c0_61], %230 {strides = array<i32>} : memref<8x32xf32, #tpu.memory_space<vmem>>, vector<8x32xf32>,
    %c0_i32_62 = arith.constant 0 : i32
    %232 = arith.cmpi eq, %arg0, %c0_i32_62 : i32
    %233 = arith.extui %232 : i1 to i32
    %c0_i32_63 = arith.constant 0 : i32
    %234 = arith.cmpi ne, %233, %c0_i32_63 : i32
    scf.if %234 {
      %c56 = arith.constant 56 : index
      %c0_64 = arith.constant 0 : index
      %235 = vector.load %arg1[%c56, %c0_64] : memref<64x1xi32, #tpu.memory_space<vmem>>, vector<8x1xi32>
      %236 = tpu.iota {dimensions = array<i32: 1>} : vector<8x56xi32>
      %237 = vector.broadcast %235 : vector<8x1xi32> to vector<8x56xi32>
      %238 = arith.cmpi eq, %237, %236 : vector<8x56xi32>
      %cst_65 = arith.constant 1.000000e+00 : f32
      %cst_66 = arith.constant 0.000000e+00 : f32
      %239 = vector.broadcast %cst_65 : f32 to vector<8x56xf32>
      %240 = vector.broadcast %cst_66 : f32 to vector<8x56xf32>
      %241 = arith.select %238, %239, %240 : vector<8x56xi1>, vector<8x56xf32>
      %c0_67 = arith.constant 0 : index
      %c0_68 = arith.constant 0 : index
      %242 = vector.load %arg2[%c0_67, %c0_68] : memref<56x32xf32, #tpu.memory_space<vmem>>, vector<56x32xf32>
      %cst_69 = arith.constant dense<0.000000e+00> : vector<8x32xf32>
      %243 = tpu.matmul %241, %242, %cst_69 {dimension_numbers = #tpu.dot_dimension_numbers<[1], [0], [0], [1], [0, 0, 1, 1], [], []>} : vector<8x56xf32>, vector<56x32xf32>, vector<8x32xf32> -> vector<8x32xf32>
      %c0_70 = arith.constant 0 : index
      %c0_71 = arith.constant 0 : index
      %244 = vector.load %arg7[%c0_70, %c0_71] : memref<32x96xf32, #tpu.memory_space<vmem>>, vector<32x96xf32>
      %cst_72 = arith.constant dense<0.000000e+00> : vector<8x96xf32>
      %245 = tpu.matmul %243, %244, %cst_72 {dimension_numbers = #tpu.dot_dimension_numbers<[1], [0], [0], [1], [0, 0, 1, 1], [], []>} : vector<8x32xf32>, vector<32x96xf32>, vector<8x96xf32> -> vector<8x96xf32>
      %c0_73 = arith.constant 0 : index
      %c0_74 = arith.constant 0 : index
      %246 = vector.load %arg8[%c0_73, %c0_74] : memref<1x96xf32, #tpu.memory_space<vmem>>, vector<1x96xf32>
      %247 = vector.broadcast %246 : vector<1x96xf32> to vector<8x96xf32>
      %248 = arith.addf %245, %247 : vector<8x96xf32>
      %249 = vector.extract_strided_slice %248 {offsets = [0, 0], sizes = [8, 64], strides = [1, 1]} : vector<8x96xf32> to vector<8x64xf32>
      %250 = arith.negf %249 : vector<8x64xf32>
      %251 = math.exp %250 : vector<8x64xf32>
      %cst_75 = arith.constant 1.000000e+00 : f32
      %252 = vector.broadcast %cst_75 : f32 to vector<8x64xf32>
      %253 = arith.addf %252, %251 : vector<8x64xf32>
      %254 = arith.divf %252, %253 : vector<8x64xf32>
      %255 = vector.extract_strided_slice %254 {offsets = [0, 0], sizes = [8, 32], strides = [1, 1]} : vector<8x64xf32> to vector<8x32xf32>
      %256 = vector.extract_strided_slice %254 {offsets = [0, 32], sizes = [8, 32], strides = [1, 1]} : vector<8x64xf32> to vector<8x32xf32>
      %257 = vector.extract_strided_slice %248 {offsets = [0, 64], sizes = [8, 32], strides = [1, 1]} : vector<8x96xf32> to vector<8x32xf32>
      %c0_76 = arith.constant 0 : index
      %c0_77 = arith.constant 0 : index
      %258 = vector.load %arg9[%c0_76, %c0_77] : memref<1x32xf32, #tpu.memory_space<vmem>>, vector<1x32xf32>
      %259 = vector.broadcast %258 : vector<1x32xf32> to vector<8x32xf32>
      %260 = arith.mulf %255, %259 : vector<8x32xf32>
      %261 = arith.addf %257, %260 : vector<8x32xf32>
      %262 = math.tanh %261 : vector<8x32xf32>
      %cst_78 = arith.constant 1.000000e+00 : f32
      %263 = vector.broadcast %cst_78 : f32 to vector<8x32xf32>
      %264 = arith.subf %263, %256 : vector<8x32xf32>
      %265 = arith.mulf %264, %262 : vector<8x32xf32>
      %c0_79 = arith.constant 0 : index
      %c0_80 = arith.constant 0 : index
      %266 = vector.load %arg10[%c0_79, %c0_80] : memref<64x4xf32, #tpu.memory_space<vmem>>, vector<64x4xf32>
      %267 = vector.extract_strided_slice %266 {offsets = [0, 0], sizes = [32, 4], strides = [1, 1]} : vector<64x4xf32> to vector<32x4xf32>
      %cst_81 = arith.constant dense<0.000000e+00> : vector<8x4xf32>
      %268 = tpu.matmul %230, %267, %cst_81 {dimension_numbers = #tpu.dot_dimension_numbers<[1], [0], [0], [1], [0, 0, 1, 1], [], []>} : vector<8x32xf32>, vector<32x4xf32>, vector<8x4xf32> -> vector<8x4xf32>
      %269 = vector.extract_strided_slice %266 {offsets = [32, 0], sizes = [32, 4], strides = [1, 1]} : vector<64x4xf32> to vector<32x4xf32>
      %cst_82 = arith.constant dense<0.000000e+00> : vector<8x4xf32>
      %270 = tpu.matmul %265, %269, %cst_82 {dimension_numbers = #tpu.dot_dimension_numbers<[1], [0], [0], [1], [0, 0, 1, 1], [], []>} : vector<8x32xf32>, vector<32x4xf32>, vector<8x4xf32> -> vector<8x4xf32>
      %271 = arith.addf %268, %270 : vector<8x4xf32>
      %c0_83 = arith.constant 0 : index
      %c0_84 = arith.constant 0 : index
      %272 = vector.load %arg11[%c0_83, %c0_84] : memref<1x4xf32, #tpu.memory_space<vmem>>, vector<1x4xf32>
      %273 = vector.broadcast %272 : vector<1x4xf32> to vector<8x4xf32>
      %274 = arith.addf %271, %273 : vector<8x4xf32>
      %cst_85 = arith.constant dense<0xFF800000> : vector<8xf32>
      %275 = vector.multi_reduction <maximumf>, %274, %cst_85 [1] : vector<8x4xf32> to vector<8xf32>
      %276 = vector.shape_cast %275 : vector<8xf32> to vector<8x1xf32>
      %277 = vector.broadcast %276 : vector<8x1xf32> to vector<8x4xf32>
      %278 = arith.subf %274, %277 : vector<8x4xf32>
      %279 = math.exp %278 : vector<8x4xf32>
      %cst_86 = arith.constant dense<0.000000e+00> : vector<8xf32>
      %280 = vector.multi_reduction <add>, %279, %cst_86 [1] : vector<8x4xf32> to vector<8xf32>
      %281 = vector.shape_cast %280 : vector<8xf32> to vector<8x1xf32>
      %282 = vector.broadcast %281 : vector<8x1xf32> to vector<8x4xf32>
      %283 = arith.divf %279, %282 : vector<8x4xf32>
      %c0_87 = arith.constant 0 : index
      %c0_88 = arith.constant 0 : index
      %284 = vector.load %arg12[%c0_87, %c0_88] : memref<8x4xf32, #tpu.memory_space<vmem>>, vector<8x4xf32>
      tpu.vector_store %arg12[%c0_87, %c0_88], %283 {strides = array<i32>} : memref<8x4xf32, #tpu.memory_space<vmem>>, vector<8x4xf32>,
    } else {
    }
    return
  }
  func.func @transform_0(%arg0: i32) -> (i32, i32) {
    %c0_i32 = arith.constant 0 : i32
    %c0_i32_0 = arith.constant 0 : i32
    return %arg0, %c0_i32 : i32, i32
  }
  func.func @transform_1(%arg0: i32) -> (i32, i32) {
    %c0_i32 = arith.constant 0 : i32
    %c0_i32_0 = arith.constant 0 : i32
    %c0_i32_1 = arith.constant 0 : i32
    return %c0_i32, %c0_i32_0 : i32, i32
  }
  func.func @transform_2(%arg0: i32) -> (i32, i32) {
    %c0_i32 = arith.constant 0 : i32
    %c0_i32_0 = arith.constant 0 : i32
    %c0_i32_1 = arith.constant 0 : i32
    return %c0_i32, %c0_i32_0 : i32, i32
  }
  func.func @transform_3(%arg0: i32) -> (i32, i32) {
    %c0_i32 = arith.constant 0 : i32
    %c0_i32_0 = arith.constant 0 : i32
    %c0_i32_1 = arith.constant 0 : i32
    return %c0_i32, %c0_i32_0 : i32, i32
  }
  func.func @transform_4(%arg0: i32) -> (i32, i32) {
    %c0_i32 = arith.constant 0 : i32
    %c0_i32_0 = arith.constant 0 : i32
    %c0_i32_1 = arith.constant 0 : i32
    return %c0_i32, %c0_i32_0 : i32, i32
  }
  func.func @transform_5(%arg0: i32) -> (i32, i32) {
    %c0_i32 = arith.constant 0 : i32
    %c0_i32_0 = arith.constant 0 : i32
    %c0_i32_1 = arith.constant 0 : i32
    return %c0_i32, %c0_i32_0 : i32, i32
  }
  func.func @transform_6(%arg0: i32) -> (i32, i32) {
    %c0_i32 = arith.constant 0 : i32
    %c0_i32_0 = arith.constant 0 : i32
    %c0_i32_1 = arith.constant 0 : i32
    return %c0_i32, %c0_i32_0 : i32, i32
  }
  func.func @transform_7(%arg0: i32) -> (i32, i32) {
    %c0_i32 = arith.constant 0 : i32
    %c0_i32_0 = arith.constant 0 : i32
    %c0_i32_1 = arith.constant 0 : i32
    return %c0_i32, %c0_i32_0 : i32, i32
  }
  func.func @transform_8(%arg0: i32) -> (i32, i32) {
    %c0_i32 = arith.constant 0 : i32
    %c0_i32_0 = arith.constant 0 : i32
    %c0_i32_1 = arith.constant 0 : i32
    return %c0_i32, %c0_i32_0 : i32, i32
  }
  func.func @transform_9(%arg0: i32) -> (i32, i32) {
    %c0_i32 = arith.constant 0 : i32
    %c0_i32_0 = arith.constant 0 : i32
    %c0_i32_1 = arith.constant 0 : i32
    return %c0_i32, %c0_i32_0 : i32, i32
  }
  func.func @transform_10(%arg0: i32) -> (i32, i32) {
    %c0_i32 = arith.constant 0 : i32
    %c0_i32_0 = arith.constant 0 : i32
    %c0_i32_1 = arith.constant 0 : i32
    return %c0_i32, %c0_i32_0 : i32, i32
  }
  func.func @transform_11(%arg0: i32) -> (i32, i32) {
    %c0_i32 = arith.constant 0 : i32
    %c0_i32_0 = arith.constant 0 : i32
    %c0_i32_1 = arith.constant 0 : i32
    return %c0_i32, %c0_i32_0 : i32, i32
  }
}

</mosaic_0001>

<llo_original>
// kernel: tpu_custom_call.1
$region0: #{tpu_custom_call.1}
  #allocation0 [shape = 'u32[]', space=smem, size = 0x4, offset = 0x4, fixed_abs, tag = 'smem constant byte address 0x4 - core index']
  #allocation1 [shape = 'u32[144,128]{1,0:T(1,128)}', space=vmem, size = 0x12000, scoped, tag = 'internal scratch']
  #allocation2 [shape = 'f32[8,32]{1,0:T(8,128)}', space=vmem, size = 0x1000, scoped, tag = 'scratch operand']
  #allocation3 [shape = 'f32[64,96]{1,0:T(8,128)}', space=vmem, size = 0x8000, scoped, tag = 'scratch operand']
  %s0 = inlined_call_operand.vmem [shape: s32[64,1], index: 0, kind: input, shape index: {}]
  %s1 = inlined_call_operand.vmem [shape: f32[56,32], index: 1, kind: input, shape index: {}]
  %s2 = inlined_call_operand.vmem [shape: f32[32,96], index: 2, kind: input, shape index: {}]
  %s3 = inlined_call_operand.vmem [shape: f32[32,96], index: 3, kind: input, shape index: {}]
  %s4 = inlined_call_operand.vmem [shape: f32[1,96], index: 4, kind: input, shape index: {}]
  %s5 = inlined_call_operand.vmem [shape: f32[1,32], index: 5, kind: input, shape index: {}]
  %s6 = inlined_call_operand.vmem [shape: f32[32,96], index: 6, kind: input, shape index: {}]
  %s7 = inlined_call_operand.vmem [shape: f32[1,96], index: 7, kind: input, shape index: {}]
  %s8 = inlined_call_operand.vmem [shape: f32[1,32], index: 8, kind: input, shape index: {}]
  %s9 = inlined_call_operand.vmem [shape: f32[64,4], index: 9, kind: input, shape index: {}]
  %s10 = inlined_call_operand.vmem [shape: f32[1,4], index: 10, kind: input, shape index: {}]
  %s11 = inlined_call_operand.vmem [shape: f32[8,4], index: 11, kind: output, shape index: {}]
  %s12 = sld [smem:[#allocation0]]
  $region62: #{tpu_custom_call.1} parent=0
    _
  %s14 = ssub.s32 1, %s12
  %s15 = scalar_select 0, %s14, %s12
  // Predicated region
  $region2: #{tpu_custom_call.1} parent=0 // pred_check
    _
  $region3: #{tpu_custom_call.1} parent=0 // pred_check_branch
    %17 = sbr.rel (0) target = $region5
  $region4: #{tpu_custom_call.1} parent=0 // pred_region
    _
  $region5: #{tpu_custom_call.1} parent=0 // pred_fallthru
    _
  // Predicated region
  $region6: #{tpu_custom_call.1} parent=0 // pred_check
    _
  $region7: #{tpu_custom_call.1} parent=0 // pred_check_branch
    %19 = sbr.rel (0) target = $region9
  $region8: #{tpu_custom_call.1} parent=0 // pred_region
    _
  $region9: #{tpu_custom_call.1} parent=0 // pred_fallthru
    _
  // Predicated region
  $region10: #{tpu_custom_call.1} parent=0 // pred_check
    _
  $region11: #{tpu_custom_call.1} parent=0 // pred_check_branch
    %21 = sbr.rel (0) target = $region13
  $region12: #{tpu_custom_call.1} parent=0 // pred_region
    _
  $region13: #{tpu_custom_call.1} parent=0 // pred_fallthru
    _
  // Predicated region
  $region14: #{tpu_custom_call.1} parent=0 // pred_check
    _
  $region15: #{tpu_custom_call.1} parent=0 // pred_check_branch
    %23 = sbr.rel (0) target = $region17
  $region16: #{tpu_custom_call.1} parent=0 // pred_region
    _
  $region17: #{tpu_custom_call.1} parent=0 // pred_fallthru
    _
  // Predicated region
  $region18: #{tpu_custom_call.1} parent=0 // pred_check
    _
  $region19: #{tpu_custom_call.1} parent=0 // pred_check_branch
    %25 = sbr.rel (0) target = $region21
  $region20: #{tpu_custom_call.1} parent=0 // pred_region
    _
  $region21: #{tpu_custom_call.1} parent=0 // pred_fallthru
    _
  // Predicated region
  $region22: #{tpu_custom_call.1} parent=0 // pred_check
    _
  $region23: #{tpu_custom_call.1} parent=0 // pred_check_branch
    %27 = sbr.rel (0) target = $region25
  $region24: #{tpu_custom_call.1} parent=0 // pred_region
    _
  $region25: #{tpu_custom_call.1} parent=0 // pred_fallthru
    _
  // Predicated region
  $region26: #{tpu_custom_call.1} parent=0 // pred_check
    _
  $region27: #{tpu_custom_call.1} parent=0 // pred_check_branch
    %29 = sbr.rel (0) target = $region29
  $region28: #{tpu_custom_call.1} parent=0 // pred_region
    _
  $region29: #{tpu_custom_call.1} parent=0 // pred_fallthru
    _
  // Predicated region
  $region30: #{tpu_custom_call.1} parent=0 // pred_check
    _
  $region31: #{tpu_custom_call.1} parent=0 // pred_check_branch
    %31 = sbr.rel (0) target = $region33
  $region32: #{tpu_custom_call.1} parent=0 // pred_region
    _
  $region33: #{tpu_custom_call.1} parent=0 // pred_fallthru
    _
  // Predicated region
  $region34: #{tpu_custom_call.1} parent=0 // pred_check
    _
  $region35: #{tpu_custom_call.1} parent=0 // pred_check_branch
    %33 = sbr.rel (0) target = $region37
  $region36: #{tpu_custom_call.1} parent=0 // pred_region
    _
  $region37: #{tpu_custom_call.1} parent=0 // pred_fallthru
    _
  // Predicated region
  $region38: #{tpu_custom_call.1} parent=0 // pred_check
    _
  $region39: #{tpu_custom_call.1} parent=0 // pred_check_branch
    %35 = sbr.rel (0) target = $region41
  $region40: #{tpu_custom_call.1} parent=0 // pred_region
    _
  $region41: #{tpu_custom_call.1} parent=0 // pred_fallthru
    _
  // Predicated region
  $region42: #{tpu_custom_call.1} parent=0 // pred_check
    _
  $region43: #{tpu_custom_call.1} parent=0 // pred_check_branch
    %37 = sbr.rel (0) target = $region45
  $region44: #{tpu_custom_call.1} parent=0 // pred_region
    _
  $region45: #{tpu_custom_call.1} parent=0 // pred_fallthru
    _
  %p38 = scmp.eq.s32.totalorder 0, 0
  // Predicated region
  $region46: #{tpu_custom_call.1} parent=0 // pred_check
    %p39 = pneg %p38
  $region47: #{tpu_custom_call.1} parent=0 // pred_check_branch
    %41 = sbr.rel (%p39) target = $region49
  $region48: #{tpu_custom_call.1} parent=0 // pred_region
    %vm42 = vcmask 261120
    %43 = vst.msk [vmem:[#allocation2] sm:$0xff] %vm42, 0.0
  $region49: #{tpu_custom_call.1} parent=0 // pred_fallthru
    _
  %v44 = vld [vmem:[%s0] sm:$0xff]
  %v45 = vld [vmem:[%s0 + $0x8] sm:$0xff]
  %v46 = vld [vmem:[%s0 + $0x10] sm:$0xff]
  %v47 = vld [vmem:[%s0 + $0x18] sm:$0xff]
  %v48 = vld [vmem:[%s0 + $0x20] sm:$0xff]
  %v49 = vld [vmem:[%s0 + $0x28] sm:$0xff]
  %v50 = vld [vmem:[%s0 + $0x30] sm:$0xff]
  %v51 = vld [vmem:[%s0 + $0x38] sm:$0xff]
  %v52 = vlaneseq
  %v53 = vand.u32 %v52, 127
  %54 = vset.pattern.permute.xlu0 0
  %55 = vperm.xlu0 %54, %v44
  %v56 = vpop.permute.xlu0 %55
  %57 = vset.pattern.permute.xlu0 0
  %58 = vperm.xlu0 %57, %v45
  %v59 = vpop.permute.xlu0 %58
  %60 = vset.pattern.permute.xlu0 0
  %61 = vperm.xlu0 %60, %v46
  %v62 = vpop.permute.xlu0 %61
  %63 = vset.pattern.permute.xlu0 0
  %64 = vperm.xlu0 %63, %v47
  %v65 = vpop.permute.xlu0 %64
  %66 = vset.pattern.permute.xlu0 0
  %67 = vperm.xlu0 %66, %v48
  %v68 = vpop.permute.xlu0 %67
  %69 = vset.pattern.permute.xlu0 0
  %70 = vperm.xlu0 %69, %v49
  %v71 = vpop.permute.xlu0 %70
  %72 = vset.pattern.permute.xlu0 0
  %73 = vperm.xlu0 %72, %v50
  %v74 = vpop.permute.xlu0 %73
  %75 = vset.pattern.permute.xlu0 0
  %76 = vperm.xlu0 %75, %v51
  %v77 = vpop.permute.xlu0 %76
  %vm78 = vcmp.eq.s32.totalorder %v56, %v53
  %vm79 = vcmp.eq.s32.totalorder %v59, %v53
  %vm80 = vcmp.eq.s32.totalorder %v62, %v53
  %vm81 = vcmp.eq.s32.totalorder %v65, %v53
  %vm82 = vcmp.eq.s32.totalorder %v68, %v53
  %vm83 = vcmp.eq.s32.totalorder %v71, %v53
  %vm84 = vcmp.eq.s32.totalorder %v74, %v53
  %vm85 = vcmp.eq.s32.totalorder %v77, %v53
  %v86 = vsel %vm78, 1.0, 0.0
  %v87 = vsel %vm79, 1.0, 0.0
  %v88 = vsel %vm80, 1.0, 0.0
  %v89 = vsel %vm81, 1.0, 0.0
  %v90 = vsel %vm82, 1.0, 0.0
  %v91 = vsel %vm83, 1.0, 0.0
  %v92 = vsel %vm84, 1.0, 0.0
  %v93 = vsel %vm85, 1.0, 0.0
  %v94 = vld [vmem:[%s1] sm:$0xff]
  %v95 = vld [vmem:[%s1 + $0x8] sm:$0xff]
  %v96 = vld [vmem:[%s1 + $0x10] sm:$0xff]
  %v97 = vld [vmem:[%s1 + $0x18] sm:$0xff]
  %v98 = vld [vmem:[%s1 + $0x20] sm:$0xff]
  %v99 = vld [vmem:[%s1 + $0x28] sm:$0xff]
  %v100 = vld [vmem:[%s1 + $0x30] sm:$0xff]
  %vm101 = vcmask 457728
  %v103 = vsel %vm101, %v86, 0
  %v106 = vsel %vm101, %v87, 0
  %v109 = vsel %vm101, %v88, 0
  %v112 = vsel %vm101, %v89, 0
  %v115 = vsel %vm101, %v90, 0
  %v118 = vsel %vm101, %v91, 0
  %v121 = vsel %vm101, %v92, 0
  %v124 = vsel %vm101, %v93, 0
  %126 = vmatprep.subr.mxu0 0.0
  %127 = vmatpush1.msra.mxu0 %v94
  %128 = vmatprep.subr.mxu0 0.0
  %129 = vmatpush1.msra.mxu0 %v95
  %130 = vmatprep.subr.mxu0 0.0
  %131 = vmatpush1.msra.mxu0 %v96
  %132 = vmatprep.subr.mxu0 0.0
  %133 = vmatpush1.msra.mxu0 %v97
  %134 = vmatprep.subr.mxu0 0.0
  %135 = vmatpush1.msra.mxu0 %v98
  %136 = vmatprep.subr.mxu0 0.0
  %137 = vmatpush1.msra.mxu0 %v99
  %138 = vmatprep.subr.mxu0 0.0
  %139 = vmatpush1.msra.mxu0 %v100
  %140 = vmatprep.subr.mxu0 0.0
  %141 = vmatpush1.msra.mxu0 0.0
  %142 = vmatprep.subr.mxu0 0.0
  %143 = vmatpush1.msra.mxu0 0.0
  %144 = vmatprep.subr.mxu0 0.0
  %145 = vmatpush1.msra.mxu0 0.0
  %146 = vmatprep.subr.mxu0 0.0
  %147 = vmatpush1.msra.mxu0 0.0
  %148 = vmatprep.subr.mxu0 0.0
  %149 = vmatpush1.msra.mxu0 0.0
  %150 = vmatprep.subr.mxu0 0.0
  %151 = vmatpush1.msra.mxu0 0.0
  %152 = vmatprep.subr.mxu0 0.0
  %153 = vmatpush1.msra.mxu0 0.0
  %154 = vmatprep.subr.mxu0 0.0
  %155 = vmatpush1.msra.mxu0 0.0
  %156 = vmatprep.subr.mxu0 0.0
  %157 = vmatpush1.msra.mxu0 0.0
  %158 = vmatprep.subr.mxu0 0.0
  %159 = vmatpush1.msra.mxu0 0.0
  %160 = vmatprep.subr.mxu0 0.0
  %161 = vmatpush1.msra.mxu0 0.0
  %162 = vmatprep.subr.mxu0 0.0
  %163 = vmatpush1.msra.mxu0 0.0
  %164 = vmatprep.subr.mxu0 0.0
  %165 = vmatpush1.msra.mxu0 0.0
  %166 = vmatprep.subr.mxu0 0.0
  %167 = vmatpush1.msra.mxu0 0.0
  %168 = vmatprep.subr.mxu0 0.0
  %169 = vmatpush1.msra.mxu0 0.0
  %170 = vmatprep.subr.mxu0 0.0
  %171 = vmatpush1.msra.mxu0 0.0
  %172 = vmatprep.subr.mxu0 0.0
  %173 = vmatpush1.msra.mxu0 0.0
  %174 = vmatprep.subr.mxu0 0.0
  %175 = vmatpush1.msra.mxu0 0.0
  %176 = vmatprep.subr.mxu0 0.0
  %177 = vmatpush1.msra.mxu0 0.0
  %178 = vmatprep.subr.mxu0 0.0
  %179 = vmatpush1.msra.mxu0 0.0
  %180 = vmatprep.subr.mxu0 0.0
  %181 = vmatpush1.msra.mxu0 0.0
  %182 = vmatprep.subr.mxu0 0.0
  %183 = vmatpush1.msra.mxu0 0.0
  %184 = vmatprep.subr.mxu0 0.0
  %185 = vmatpush1.msra.mxu0 0.0
  %186 = vmatprep.subr.mxu0 0.0
  %187 = vmatpush1.msra.mxu0 0.0
  %188 = vmatprep.subr.mxu0 0.0
  %189 = vmatpush1.msra.mxu0 0.0
  %190 = vmatprep.mubr.f32.mxu0 0.0
  %191 = vmatmul.mubr.f32.gmra.mrb[0].mxu0 %v103
  %v192 = vpop.f32.mrb[0].mxu0
  %v193 = vadd.f32 0.0, %v192
  %v194 = vpop.f32.mrb[0].mxu0
  %195 = vmatprep.mubr.f32.mxu0 0.0
  %196 = vmatmul.mubr.f32.gmra.mrb[0].mxu0 %v106
  %v197 = vpop.f32.mrb[0].mxu0
  %v198 = vadd.f32 0.0, %v197
  %v199 = vpop.f32.mrb[0].mxu0
  %200 = vmatprep.mubr.f32.mxu0 0.0
  %201 = vmatmul.mubr.f32.gmra.mrb[0].mxu0 %v109
  %v202 = vpop.f32.mrb[0].mxu0
  %v203 = vadd.f32 0.0, %v202
  %v204 = vpop.f32.mrb[0].mxu0
  %205 = vmatprep.mubr.f32.mxu0 0.0
  %206 = vmatmul.mubr.f32.gmra.mrb[0].mxu0 %v112
  %v207 = vpop.f32.mrb[0].mxu0
  %v208 = vadd.f32 0.0, %v207
  %v209 = vpop.f32.mrb[0].mxu0
  %210 = vmatprep.mubr.f32.mxu0 0.0
  %211 = vmatmul.mubr.f32.gmra.mrb[0].mxu0 %v115
  %v212 = vpop.f32.mrb[0].mxu0
  %v213 = vadd.f32 0.0, %v212
  %v214 = vpop.f32.mrb[0].mxu0
  %215 = vmatprep.mubr.f32.mxu0 0.0
  %216 = vmatmul.mubr.f32.gmra.mrb[0].mxu0 %v118
  %v217 = vpop.f32.mrb[0].mxu0
  %v218 = vadd.f32 0.0, %v217
  %v219 = vpop.f32.mrb[0].mxu0
  %220 = vmatprep.mubr.f32.mxu0 0.0
  %221 = vmatmul.mubr.f32.gmra.mrb[0].mxu0 %v121
  %v222 = vpop.f32.mrb[0].mxu0
  %v223 = vadd.f32 0.0, %v222
  %v224 = vpop.f32.mrb[0].mxu0
  %225 = vmatprep.mubr.f32.mxu0 0.0
  %226 = vmatmul.mubr.f32.gmra.mrb[0].mxu0 %v124
  %v227 = vpop.f32.mrb[0].mxu0
  %v228 = vadd.f32 0.0, %v227
  %v229 = vpop.f32.mrb[0].mxu0
  %230 = vdwg.mxu0
  %v231 = vld [vmem:[%s2] sm:$0xff]
  %v232 = vld [vmem:[%s2 + $0x8] sm:$0xff]
  %v233 = vld [vmem:[%s2 + $0x10] sm:$0xff]
  %v234 = vld [vmem:[%s2 + $0x18] sm:$0xff]
  %v235 = vld [vmem:[%s4] sm:$0x1]
  %v237 = vlaneseq
  %v238 = vshrl.u32 %v237, 7
  %v239 = vsub.s32 0, %v238
  %v240 = vrot.slane %v235, %v239
  %vm242 = vcmask 261120
  %v244 = vsel %vm242, %v193, 0
  %v247 = vsel %vm242, %v198, 0
  %v250 = vsel %vm242, %v203, 0
  %v253 = vsel %vm242, %v208, 0
  %v256 = vsel %vm242, %v213, 0
  %v259 = vsel %vm242, %v218, 0
  %v262 = vsel %vm242, %v223, 0
  %v265 = vsel %vm242, %v228, 0
  %267 = vmatprep.subr.mxu0 0.0
  %268 = vmatpush1.msra.mxu0 %v231
  %269 = vmatprep.subr.mxu0 0.0
  %270 = vmatpush1.msra.mxu0 %v232
  %271 = vmatprep.subr.mxu0 0.0
  %272 = vmatpush1.msra.mxu0 %v233
  %273 = vmatprep.subr.mxu0 0.0
  %274 = vmatpush1.msra.mxu0 %v234
  %275 = vmatprep.subr.mxu0 0.0
  %276 = vmatpush1.msra.mxu0 0.0
  %277 = vmatprep.subr.mxu0 0.0
  %278 = vmatpush1.msra.mxu0 0.0
  %279 = vmatprep.subr.mxu0 0.0
  %280 = vmatpush1.msra.mxu0 0.0
  %281 = vmatprep.subr.mxu0 0.0
  %282 = vmatpush1.msra.mxu0 0.0
  %283 = vmatprep.subr.mxu0 0.0
  %284 = vmatpush1.msra.mxu0 0.0
  %285 = vmatprep.subr.mxu0 0.0
  %286 = vmatpush1.msra.mxu0 0.0
  %287 = vmatprep.subr.mxu0 0.0
  %288 = vmatpush1.msra.mxu0 0.0
  %289 = vmatprep.subr.mxu0 0.0
  %290 = vmatpush1.msra.mxu0 0.0
  %291 = vmatprep.subr.mxu0 0.0
  %292 = vmatpush1.msra.mxu0 0.0
  %293 = vmatprep.subr.mxu0 0.0
  %294 = vmatpush1.msra.mxu0 0.0
  %295 = vmatprep.subr.mxu0 0.0
  %296 = vmatpush1.msra.mxu0 0.0
  %297 = vmatprep.subr.mxu0 0.0
  %298 = vmatpush1.msra.mxu0 0.0
  %299 = vmatprep.subr.mxu0 0.0
  %300 = vmatpush1.msra.mxu0 0.0
  %301 = vmatprep.subr.mxu0 0.0
  %302 = vmatpush1.msra.mxu0 0.0
  %303 = vmatprep.subr.mxu0 0.0
  %304 = vmatpush1.msra.mxu0 0.0
  %305 = vmatprep.subr.mxu0 0.0
  %306 = vmatpush1.msra.mxu0 0.0
  %307 = vmatprep.subr.mxu0 0.0
  %308 = vmatpush1.msra.mxu0 0.0
  %309 = vmatprep.subr.mxu0 0.0
  %310 = vmatpush1.msra.mxu0 0.0
  %311 = vmatprep.subr.mxu0 0.0
  %312 = vmatpush1.msra.mxu0 0.0
  %313 = vmatprep.subr.mxu0 0.0
  %314 = vmatpush1.msra.mxu0 0.0
  %315 = vmatprep.subr.mxu0 0.0
  %316 = vmatpush1.msra.mxu0 0.0
  %317 = vmatprep.subr.mxu0 0.0
  %318 = vmatpush1.msra.mxu0 0.0
  %319 = vmatprep.subr.mxu0 0.0
  %320 = vmatpush1.msra.mxu0 0.0
  %321 = vmatprep.subr.mxu0 0.0
  %322 = vmatpush1.msra.mxu0 0.0
  %323 = vmatprep.subr.mxu0 0.0
  %324 = vmatpush1.msra.mxu0 0.0
  %325 = vmatprep.subr.mxu0 0.0
  %326 = vmatpush1.msra.mxu0 0.0
  %327 = vmatprep.subr.mxu0 0.0
  %328 = vmatpush1.msra.mxu0 0.0
  %329 = vmatprep.subr.mxu0 0.0
  %330 = vmatpush1.msra.mxu0 0.0
  %331 = vmatprep.mubr.f32.mxu0 0.0
  %332 = vmatmul.mubr.f32.gmra.mrb[0].mxu0 %v244
  %v333 = vpop.f32.mrb[0].mxu0
  %v334 = vadd.f32 %v240, %v333
  %v335 = vpop.f32.mrb[0].mxu0
  %336 = vmatprep.mubr.f32.mxu0 0.0
  %337 = vmatmul.mubr.f32.gmra.mrb[0].mxu0 %v247
  %v338 = vpop.f32.mrb[0].mxu0
  %v339 = vadd.f32 %v240, %v338
  %v340 = vpop.f32.mrb[0].mxu0
  %341 = vmatprep.mubr.f32.mxu0 0.0
  %342 = vmatmul.mubr.f32.gmra.mrb[0].mxu0 %v250
  %v343 = vpop.f32.mrb[0].mxu0
  %v344 = vadd.f32 %v240, %v343
  %v345 = vpop.f32.mrb[0].mxu0
  %346 = vmatprep.mubr.f32.mxu0 0.0
  %347 = vmatmul.mubr.f32.gmra.mrb[0].mxu0 %v253
  %v348 = vpop.f32.mrb[0].mxu0
  %v349 = vadd.f32 %v240, %v348
  %v350 = vpop.f32.mrb[0].mxu0
  %351 = vmatprep.mubr.f32.mxu0 0.0
  %352 = vmatmul.mubr.f32.gmra.mrb[0].mxu0 %v256
  %v353 = vpop.f32.mrb[0].mxu0
  %v354 = vadd.f32 %v240, %v353
  %v355 = vpop.f32.mrb[0].mxu0
  %356 = vmatprep.mubr.f32.mxu0 0.0
  %357 = vmatmul.mubr.f32.gmra.mrb[0].mxu0 %v259
  %v358 = vpop.f32.mrb[0].mxu0
  %v359 = vadd.f32 %v240, %v358
  %v360 = vpop.f32.mrb[0].mxu0
  %361 = vmatprep.mubr.f32.mxu0 0.0
  %362 = vmatmul.mubr.f32.gmra.mrb[0].mxu0 %v262
  %v363 = vpop.f32.mrb[0].mxu0
  %v364 = vadd.f32 %v240, %v363
  %v365 = vpop.f32.mrb[0].mxu0
  %366 = vmatprep.mubr.f32.mxu0 0.0
  %367 = vmatmul.mubr.f32.gmra.mrb[0].mxu0 %v265
  %v368 = vpop.f32.mrb[0].mxu0
  %v369 = vadd.f32 %v240, %v368
  %v370 = vpop.f32.mrb[0].mxu0
  %371 = vdwg.mxu0
  %vm372 = vcmask 785408
  %373 = vst.msk [vmem:[#allocation3] sm:$0xff] %vm372, %v334
  %374 = vst.msk [vmem:[#allocation3 + $0x8] sm:$0xff] %vm372, %v339
  %375 = vst.msk [vmem:[#allocation3 + $0x10] sm:$0xff] %vm372, %v344
  %376 = vst.msk [vmem:[#allocation3 + $0x18] sm:$0xff] %vm372, %v349
  %377 = vst.msk [vmem:[#allocation3 + $0x20] sm:$0xff] %vm372, %v354
  %378 = vst.msk [vmem:[#allocation3 + $0x28] sm:$0xff] %vm372, %v359
  %379 = vst.msk [vmem:[#allocation3 + $0x30] sm:$0xff] %vm372, %v364
  %380 = vst.msk [vmem:[#allocation3 + $0x38] sm:$0xff] %vm372, %v369
  %v381 = vld [vmem:[%s3] sm:$0xff]
  %v382 = vld [vmem:[%s3 + $0x8] sm:$0xff]
  %v383 = vld [vmem:[%s3 + $0x10] sm:$0xff]
  %v384 = vld [vmem:[%s3 + $0x18] sm:$0xff]
  %v385 = vld [vmem:[%s5] sm:$0x1]
  %v387 = vlaneseq
  %v388 = vshrl.u32 %v387, 7
  %v389 = vsub.s32 0, %v388
  %v390 = vrot.slane %v385, %v389
  %v391 = vld [vmem:[#allocation2] sm:$0xff]
  %v392 = vld [vmem:[#allocation3] sm:$0xff]
  %v394 = vsel %vm242, %v391, 0
  %396 = vmatprep.subr.mxu0 0.0
  %397 = vmatpush1.msra.mxu0 %v381
  %398 = vmatprep.subr.mxu0 0.0
  %399 = vmatpush1.msra.mxu0 %v382
  %400 = vmatprep.subr.mxu0 0.0
  %401 = vmatpush1.msra.mxu0 %v383
  %402 = vmatprep.subr.mxu0 0.0
  %403 = vmatpush1.msra.mxu0 %v384
  %404 = vmatprep.subr.mxu0 0.0
  %405 = vmatpush1.msra.mxu0 0.0
  %406 = vmatprep.subr.mxu0 0.0
  %407 = vmatpush1.msra.mxu0 0.0
  %408 = vmatprep.subr.mxu0 0.0
  %409 = vmatpush1.msra.mxu0 0.0
  %410 = vmatprep.subr.mxu0 0.0
  %411 = vmatpush1.msra.mxu0 0.0
  %412 = vmatprep.subr.mxu0 0.0
  %413 = vmatpush1.msra.mxu0 0.0
  %414 = vmatprep.subr.mxu0 0.0
  %415 = vmatpush1.msra.mxu0 0.0
  %416 = vmatprep.subr.mxu0 0.0
  %417 = vmatpush1.msra.mxu0 0.0
  %418 = vmatprep.subr.mxu0 0.0
  %419 = vmatpush1.msra.mxu0 0.0
  %420 = vmatprep.subr.mxu0 0.0
  %421 = vmatpush1.msra.mxu0 0.0
  %422 = vmatprep.subr.mxu0 0.0
  %423 = vmatpush1.msra.mxu0 0.0
  %424 = vmatprep.subr.mxu0 0.0
  %425 = vmatpush1.msra.mxu0 0.0
  %426 = vmatprep.subr.mxu0 0.0
  %427 = vmatpush1.msra.mxu0 0.0
  %428 = vmatprep.subr.mxu0 0.0
  %429 = vmatpush1.msra.mxu0 0.0
  %430 = vmatprep.subr.mxu0 0.0
  %431 = vmatpush1.msra.mxu0 0.0
  %432 = vmatprep.subr.mxu0 0.0
  %433 = vmatpush1.msra.mxu0 0.0
  %434 = vmatprep.subr.mxu0 0.0
  %435 = vmatpush1.msra.mxu0 0.0
  %436 = vmatprep.subr.mxu0 0.0
  %437 = vmatpush1.msra.mxu0 0.0
  %438 = vmatprep.subr.mxu0 0.0
  %439 = vmatpush1.msra.mxu0 0.0
  %440 = vmatprep.subr.mxu0 0.0
  %441 = vmatpush1.msra.mxu0 0.0
  %442 = vmatprep.subr.mxu0 0.0
  %443 = vmatpush1.msra.mxu0 0.0
  %444 = vmatprep.subr.mxu0 0.0
  %445 = vmatpush1.msra.mxu0 0.0
  %446 = vmatprep.subr.mxu0 0.0
  %447 = vmatpush1.msra.mxu0 0.0
  %448 = vmatprep.subr.mxu0 0.0
  %449 = vmatpush1.msra.mxu0 0.0
  %450 = vmatprep.subr.mxu0 0.0
  %451 = vmatpush1.msra.mxu0 0.0
  %452 = vmatprep.subr.mxu0 0.0
  %453 = vmatpush1.msra.mxu0 0.0
  %454 = vmatprep.subr.mxu0 0.0
  %455 = vmatpush1.msra.mxu0 0.0
  %456 = vmatprep.subr.mxu0 0.0
  %457 = vmatpush1.msra.mxu0 0.0
  %458 = vmatprep.subr.mxu0 0.0
  %459 = vmatpush1.msra.mxu0 0.0
  %460 = vmatprep.mubr.f32.mxu0 0.0
  %461 = vmatmul.mubr.f32.gmra.mrb[0].mxu0 %v394
  %v462 = vpop.f32.mrb[0].mxu0
  %v463 = vadd.f32 0.0, %v462
  %v464 = vpop.f32.mrb[0].mxu0
  %465 = vdwg.mxu0
  %v466 = vadd.f32 %v392, %v463
  %v467 = vxor.u32 %v466, 2147483648
  %v468 = vmul.f32 %v467, 1.442695
  %v469 = vpow.pop %v468
  %v470 = vadd.f32 %v469, 1.0
  %v471 = vrcp.pop %v470
  %v472 = vmul.f32 1.0, %v471
  %473 = vrot.lane.b32.xlu0 %v390, 64
  %v474 = vpop.permute.xlu0 %473
  %v476 = vadd.f32 %v463, %v474
  %478 = vrot.lane.b32.xlu0 %v476, 64
  %v479 = vpop.permute.xlu0 %478
  %v481 = vmul.f32 %v472, %v479
  %483 = vrot.lane.b32.xlu0 %v481, 64
  %v484 = vpop.permute.xlu0 %483
  %v486 = vadd.f32 %v392, %v484
  %v487 = vtanh.pop %v486
  %v488 = vsub.f32 1.0, %v472
  %490 = vrot.lane.b32.xlu0 %v487, 96
  %v491 = vpop.permute.xlu0 %490
  %v493 = vmul.f32 %v488, %v491
  %494 = vrot.lane.b32.xlu0 %v391, 32
  %v495 = vpop.permute.xlu0 %494
  %v497 = vmul.f32 %v472, %v495
  %v498 = vadd.f32 %v493, %v497
  %s499 = scalar_lea.vmem [#allocation3], 8
  %v500 = vld [vmem:[%s499] sm:$0xff]
  %502 = vrot.lane.b32.xlu0 %v498, 96
  %v503 = vpop.permute.xlu0 %502
  %v504 = vsel %vm242, %v503, 0
  %506 = vmatprep.subr.mxu0 0.0
  %507 = vmatpush1.msra.mxu0 %v381
  %508 = vmatprep.subr.mxu0 0.0
  %509 = vmatpush1.msra.mxu0 %v382
  %510 = vmatprep.subr.mxu0 0.0
  %511 = vmatpush1.msra.mxu0 %v383
  %512 = vmatprep.subr.mxu0 0.0
  %513 = vmatpush1.msra.mxu0 %v384
  %514 = vmatprep.subr.mxu0 0.0
  %515 = vmatpush1.msra.mxu0 0.0
  %516 = vmatprep.subr.mxu0 0.0
  %517 = vmatpush1.msra.mxu0 0.0
  %518 = vmatprep.subr.mxu0 0.0
  %519 = vmatpush1.msra.mxu0 0.0
  %520 = vmatprep.subr.mxu0 0.0
  %521 = vmatpush1.msra.mxu0 0.0
  %522 = vmatprep.subr.mxu0 0.0
  %523 = vmatpush1.msra.mxu0 0.0
  %524 = vmatprep.subr.mxu0 0.0
  %525 = vmatpush1.msra.mxu0 0.0
  %526 = vmatprep.subr.mxu0 0.0
  %527 = vmatpush1.msra.mxu0 0.0
  %528 = vmatprep.subr.mxu0 0.0
  %529 = vmatpush1.msra.mxu0 0.0
  %530 = vmatprep.subr.mxu0 0.0
  %531 = vmatpush1.msra.mxu0 0.0
  %532 = vmatprep.subr.mxu0 0.0
  %533 = vmatpush1.msra.mxu0 0.0
  %534 = vmatprep.subr.mxu0 0.0
  %535 = vmatpush1.msra.mxu0 0.0
  %536 = vmatprep.subr.mxu0 0.0
  %537 = vmatpush1.msra.mxu0 0.0
  %538 = vmatprep.subr.mxu0 0.0
  %539 = vmatpush1.msra.mxu0 0.0
  %540 = vmatprep.subr.mxu0 0.0
  %541 = vmatpush1.msra.mxu0 0.0
  %542 = vmatprep.subr.mxu0 0.0
  %543 = vmatpush1.msra.mxu0 0.0
  %544 = vmatprep.subr.mxu0 0.0
  %545 = vmatpush1.msra.mxu0 0.0
  %546 = vmatprep.subr.mxu0 0.0
  %547 = vmatpush1.msra.mxu0 0.0
  %548 = vmatprep.subr.mxu0 0.0
  %549 = vmatpush1.msra.mxu0 0.0
  %550 = vmatprep.subr.mxu0 0.0
  %551 = vmatpush1.msra.mxu0 0.0
  %552 = vmatprep.subr.mxu0 0.0
  %553 = vmatpush1.msra.mxu0 0.0
  %554 = vmatprep.subr.mxu0 0.0
  %555 = vmatpush1.msra.mxu0 0.0
  %556 = vmatprep.subr.mxu0 0.0
  %557 = vmatpush1.msra.mxu0 0.0
  %558 = vmatprep.subr.mxu0 0.0
  %559 = vmatpush1.msra.mxu0 0.0
  %560 = vmatprep.subr.mxu0 0.0
  %561 = vmatpush1.msra.mxu0 0.0
  %562 = vmatprep.subr.mxu0 0.0
  %563 = vmatpush1.msra.mxu0 0.0
  %564 = vmatprep.subr.mxu0 0.0
  %565 = vmatpush1.msra.mxu0 0.0
  %566 = vmatprep.subr.mxu0 0.0
  %567 = vmatpush1.msra.mxu0 0.0
  %568 = vmatprep.subr.mxu0 0.0
  %569 = vmatpush1.msra.mxu0 0.0
  %570 = vmatprep.mubr.f32.mxu0 0.0
  %571 = vmatmul.mubr.f32.gmra.mrb[0].mxu0 %v504
  %v572 = vpop.f32.mrb[0].mxu0
  %v573 = vadd.f32 0.0, %v572
  %v574 = vpop.f32.mrb[0].mxu0
  %575 = vdwg.mxu0
  %v576 = vadd.f32 %v500, %v573
  %v577 = vxor.u32 %v576, 2147483648
  %v578 = vmul.f32 %v577, 1.442695
  %v579 = vpow.pop %v578
  %v580 = vadd.f32 %v579, 1.0
  %v581 = vrcp.pop %v580
  %v582 = vmul.f32 1.0, %v581
  %v583 = vadd.f32 %v573, %v474
  %585 = vrot.lane.b32.xlu0 %v583, 64
  %v586 = vpop.permute.xlu0 %585
  %v588 = vmul.f32 %v582, %v586
  %590 = vrot.lane.b32.xlu0 %v588, 64
  %v591 = vpop.permute.xlu0 %590
  %v593 = vadd.f32 %v500, %v591
  %v594 = vtanh.pop %v593
  %v595 = vsub.f32 1.0, %v582
  %597 = vrot.lane.b32.xlu0 %v594, 96
  %v598 = vpop.permute.xlu0 %597
  %v600 = vmul.f32 %v595, %v598
  %v601 = vmul.f32 %v582, %v498
  %v602 = vadd.f32 %v600, %v601
  %s603 = scalar_lea.vmem [#allocation3], 16
  %v604 = vld [vmem:[%s603] sm:$0xff]
  %606 = vrot.lane.b32.xlu0 %v602, 96
  %v607 = vpop.permute.xlu0 %606
  %v608 = vsel %vm242, %v607, 0
  %610 = vmatprep.subr.mxu0 0.0
  %611 = vmatpush1.msra.mxu0 %v381
  %612 = vmatprep.subr.mxu0 0.0
  %613 = vmatpush1.msra.mxu0 %v382
  %614 = vmatprep.subr.mxu0 0.0
  %615 = vmatpush1.msra.mxu0 %v383
  %616 = vmatprep.subr.mxu0 0.0
  %617 = vmatpush1.msra.mxu0 %v384
  %618 = vmatprep.subr.mxu0 0.0
  %619 = vmatpush1.msra.mxu0 0.0
  %620 = vmatprep.subr.mxu0 0.0
  %621 = vmatpush1.msra.mxu0 0.0
  %622 = vmatprep.subr.mxu0 0.0
  %623 = vmatpush1.msra.mxu0 0.0
  %624 = vmatprep.subr.mxu0 0.0
  %625 = vmatpush1.msra.mxu0 0.0
  %626 = vmatprep.subr.mxu0 0.0
  %627 = vmatpush1.msra.mxu0 0.0
  %628 = vmatprep.subr.mxu0 0.0
  %629 = vmatpush1.msra.mxu0 0.0
  %630 = vmatprep.subr.mxu0 0.0
  %631 = vmatpush1.msra.mxu0 0.0
  %632 = vmatprep.subr.mxu0 0.0
  %633 = vmatpush1.msra.mxu0 0.0
  %634 = vmatprep.subr.mxu0 0.0
  %635 = vmatpush1.msra.mxu0 0.0
  %636 = vmatprep.subr.mxu0 0.0
  %637 = vmatpush1.msra.mxu0 0.0
  %638 = vmatprep.subr.mxu0 0.0
  %639 = vmatpush1.msra.mxu0 0.0
  %640 = vmatprep.subr.mxu0 0.0
  %641 = vmatpush1.msra.mxu0 0.0
  %642 = vmatprep.subr.mxu0 0.0
  %643 = vmatpush1.msra.mxu0 0.0
  %644 = vmatprep.subr.mxu0 0.0
  %645 = vmatpush1.msra.mxu0 0.0
  %646 = vmatprep.subr.mxu0 0.0
  %647 = vmatpush1.msra.mxu0 0.0
  %648 = vmatprep.subr.mxu0 0.0
  %649 = vmatpush1.msra.mxu0 0.0
  %650 = vmatprep.subr.mxu0 0.0
  %651 = vmatpush1.msra.mxu0 0.0
  %652 = vmatprep.subr.mxu0 0.0
  %653 = vmatpush1.msra.mxu0 0.0
  %654 = vmatprep.subr.mxu0 0.0
  %655 = vmatpush1.msra.mxu0 0.0
  %656 = vmatprep.subr.mxu0 0.0
  %657 = vmatpush1.msra.mxu0 0.0
  %658 = vmatprep.subr.mxu0 0.0
  %659 = vmatpush1.msra.mxu0 0.0
  %660 = vmatprep.subr.mxu0 0.0
  %661 = vmatpush1.msra.mxu0 0.0
  %662 = vmatprep.subr.mxu0 0.0
  %663 = vmatpush1.msra.mxu0 0.0
  %664 = vmatprep.subr.mxu0 0.0
  %665 = vmatpush1.msra.mxu0 0.0
  %666 = vmatprep.subr.mxu0 0.0
  %667 = vmatpush1.msra.mxu0 0.0
  %668 = vmatprep.subr.mxu0 0.0
  %669 = vmatpush1.msra.mxu0 0.0
  %670 = vmatprep.subr.mxu0 0.0
  %671 = vmatpush1.msra.mxu0 0.0
  %672 = vmatprep.subr.mxu0 0.0
  %673 = vmatpush1.msra.mxu0 0.0
  %674 = vmatprep.mubr.f32.mxu0 0.0
  %675 = vmatmul.mubr.f32.gmra.mrb[0].mxu0 %v608
  %v676 = vpop.f32.mrb[0].mxu0
  %v677 = vadd.f32 0.0, %v676
  %v678 = vpop.f32.mrb[0].mxu0
  %679 = vdwg.mxu0
  %v680 = vadd.f32 %v604, %v677
  %v681 = vxor.u32 %v680, 2147483648
  %v682 = vmul.f32 %v681, 1.442695
  %v683 = vpow.pop %v682
  %v684 = vadd.f32 %v683, 1.0
  %v685 = vrcp.pop %v684
  %v686 = vmul.f32 1.0, %v685
  %v687 = vadd.f32 %v677, %v474
  %689 = vrot.lane.b32.xlu0 %v687, 64
  %v690 = vpop.permute.xlu0 %689
  %v692 = vmul.f32 %v686, %v690
  %694 = vrot.lane.b32.xlu0 %v692, 64
  %v695 = vpop.permute.xlu0 %694
  %v697 = vadd.f32 %v604, %v695
  %v698 = vtanh.pop %v697
  %v699 = vsub.f32 1.0, %v686
  %701 = vrot.lane.b32.xlu0 %v698, 96
  %v702 = vpop.permute.xlu0 %701
  %v704 = vmul.f32 %v699, %v702
  %v705 = vmul.f32 %v686, %v602
  %v706 = vadd.f32 %v704, %v705
  %s707 = scalar_lea.vmem [#allocation3], 24
  %v708 = vld [vmem:[%s707] sm:$0xff]
  %710 = vrot.lane.b32.xlu0 %v706, 96
  %v711 = vpop.permute.xlu0 %710
  %v712 = vsel %vm242, %v711, 0
  %714 = vmatprep.subr.mxu0 0.0
  %715 = vmatpush1.msra.mxu0 %v381
  %716 = vmatprep.subr.mxu0 0.0
  %717 = vmatpush1.msra.mxu0 %v382
  %718 = vmatprep.subr.mxu0 0.0
  %719 = vmatpush1.msra.mxu0 %v383
  %720 = vmatprep.subr.mxu0 0.0
  %721 = vmatpush1.msra.mxu0 %v384
  %722 = vmatprep.subr.mxu0 0.0
  %723 = vmatpush1.msra.mxu0 0.0
  %724 = vmatprep.subr.mxu0 0.0
  %725 = vmatpush1.msra.mxu0 0.0
  %726 = vmatprep.subr.mxu0 0.0
  %727 = vmatpush1.msra.mxu0 0.0
  %728 = vmatprep.subr.mxu0 0.0
  %729 = vmatpush1.msra.mxu0 0.0
  %730 = vmatprep.subr.mxu0 0.0
  %731 = vmatpush1.msra.mxu0 0.0
  %732 = vmatprep.subr.mxu0 0.0
  %733 = vmatpush1.msra.mxu0 0.0
  %734 = vmatprep.subr.mxu0 0.0
  %735 = vmatpush1.msra.mxu0 0.0
  %736 = vmatprep.subr.mxu0 0.0
  %737 = vmatpush1.msra.mxu0 0.0
  %738 = vmatprep.subr.mxu0 0.0
  %739 = vmatpush1.msra.mxu0 0.0
  %740 = vmatprep.subr.mxu0 0.0
  %741 = vmatpush1.msra.mxu0 0.0
  %742 = vmatprep.subr.mxu0 0.0
  %743 = vmatpush1.msra.mxu0 0.0
  %744 = vmatprep.subr.mxu0 0.0
  %745 = vmatpush1.msra.mxu0 0.0
  %746 = vmatprep.subr.mxu0 0.0
  %747 = vmatpush1.msra.mxu0 0.0
  %748 = vmatprep.subr.mxu0 0.0
  %749 = vmatpush1.msra.mxu0 0.0
  %750 = vmatprep.subr.mxu0 0.0
  %751 = vmatpush1.msra.mxu0 0.0
  %752 = vmatprep.subr.mxu0 0.0
  %753 = vmatpush1.msra.mxu0 0.0
  %754 = vmatprep.subr.mxu0 0.0
  %755 = vmatpush1.msra.mxu0 0.0
  %756 = vmatprep.subr.mxu0 0.0
  %757 = vmatpush1.msra.mxu0 0.0
  %758 = vmatprep.subr.mxu0 0.0
  %759 = vmatpush1.msra.mxu0 0.0
  %760 = vmatprep.subr.mxu0 0.0
  %761 = vmatpush1.msra.mxu0 0.0
  %762 = vmatprep.subr.mxu0 0.0
  %763 = vmatpush1.msra.mxu0 0.0
  %764 = vmatprep.subr.mxu0 0.0
  %765 = vmatpush1.msra.mxu0 0.0
  %766 = vmatprep.subr.mxu0 0.0
  %767 = vmatpush1.msra.mxu0 0.0
  %768 = vmatprep.subr.mxu0 0.0
  %769 = vmatpush1.msra.mxu0 0.0
  %770 = vmatprep.subr.mxu0 0.0
  %771 = vmatpush1.msra.mxu0 0.0
  %772 = vmatprep.subr.mxu0 0.0
  %773 = vmatpush1.msra.mxu0 0.0
  %774 = vmatprep.subr.mxu0 0.0
  %775 = vmatpush1.msra.mxu0 0.0
  %776 = vmatprep.subr.mxu0 0.0
  %777 = vmatpush1.msra.mxu0 0.0
  %778 = vmatprep.mubr.f32.mxu0 0.0
  %779 = vmatmul.mubr.f32.gmra.mrb[0].mxu0 %v712
  %v780 = vpop.f32.mrb[0].mxu0
  %v781 = vadd.f32 0.0, %v780
  %v782 = vpop.f32.mrb[0].mxu0
  %783 = vdwg.mxu0
  %v784 = vadd.f32 %v708, %v781
  %v785 = vxor.u32 %v784, 2147483648
  %v786 = vmul.f32 %v785, 1.442695
  %v787 = vpow.pop %v786
  %v788 = vadd.f32 %v787, 1.0
  %v789 = vrcp.pop %v788
  %v790 = vmul.f32 1.0, %v789
  %v791 = vadd.f32 %v781, %v474
  %793 = vrot.lane.b32.xlu0 %v791, 64
  %v794 = vpop.permute.xlu0 %793
  %v796 = vmul.f32 %v790, %v794
  %798 = vrot.lane.b32.xlu0 %v796, 64
  %v799 = vpop.permute.xlu0 %798
  %v801 = vadd.f32 %v708, %v799
  %v802 = vtanh.pop %v801
  %v803 = vsub.f32 1.0, %v790
  %805 = vrot.lane.b32.xlu0 %v802, 96
  %v806 = vpop.permute.xlu0 %805
  %v808 = vmul.f32 %v803, %v806
  %v809 = vmul.f32 %v790, %v706
  %v810 = vadd.f32 %v808, %v809
  %s811 = scalar_lea.vmem [#allocation3], 32
  %v812 = vld [vmem:[%s811] sm:$0xff]
  %814 = vrot.lane.b32.xlu0 %v810, 96
  %v815 = vpop.permute.xlu0 %814
  %v816 = vsel %vm242, %v815, 0
  %818 = vmatprep.subr.mxu0 0.0
  %819 = vmatpush1.msra.mxu0 %v381
  %820 = vmatprep.subr.mxu0 0.0
  %821 = vmatpush1.msra.mxu0 %v382
  %822 = vmatprep.subr.mxu0 0.0
  %823 = vmatpush1.msra.mxu0 %v383
  %824 = vmatprep.subr.mxu0 0.0
  %825 = vmatpush1.msra.mxu0 %v384
  %826 = vmatprep.subr.mxu0 0.0
  %827 = vmatpush1.msra.mxu0 0.0
  %828 = vmatprep.subr.mxu0 0.0
  %829 = vmatpush1.msra.mxu0 0.0
  %830 = vmatprep.subr.mxu0 0.0
  %831 = vmatpush1.msra.mxu0 0.0
  %832 = vmatprep.subr.mxu0 0.0
  %833 = vmatpush1.msra.mxu0 0.0
  %834 = vmatprep.subr.mxu0 0.0
  %835 = vmatpush1.msra.mxu0 0.0
  %836 = vmatprep.subr.mxu0 0.0
  %837 = vmatpush1.msra.mxu0 0.0
  %838 = vmatprep.subr.mxu0 0.0
  %839 = vmatpush1.msra.mxu0 0.0
  %840 = vmatprep.subr.mxu0 0.0
  %841 = vmatpush1.msra.mxu0 0.0
  %842 = vmatprep.subr.mxu0 0.0
  %843 = vmatpush1.msra.mxu0 0.0
  %844 = vmatprep.subr.mxu0 0.0
  %845 = vmatpush1.msra.mxu0 0.0
  %846 = vmatprep.subr.mxu0 0.0
  %847 = vmatpush1.msra.mxu0 0.0
  %848 = vmatprep.subr.mxu0 0.0
  %849 = vmatpush1.msra.mxu0 0.0
  %850 = vmatprep.subr.mxu0 0.0
  %851 = vmatpush1.msra.mxu0 0.0
  %852 = vmatprep.subr.mxu0 0.0
  %853 = vmatpush1.msra.mxu0 0.0
  %854 = vmatprep.subr.mxu0 0.0
  %855 = vmatpush1.msra.mxu0 0.0
  %856 = vmatprep.subr.mxu0 0.0
  %857 = vmatpush1.msra.mxu0 0.0
  %858 = vmatprep.subr.mxu0 0.0
  %859 = vmatpush1.msra.mxu0 0.0
  %860 = vmatprep.subr.mxu0 0.0
  %861 = vmatpush1.msra.mxu0 0.0
  %862 = vmatprep.subr.mxu0 0.0
  %863 = vmatpush1.msra.mxu0 0.0
  %864 = vmatprep.subr.mxu0 0.0
  %865 = vmatpush1.msra.mxu0 0.0
  %866 = vmatprep.subr.mxu0 0.0
  %867 = vmatpush1.msra.mxu0 0.0
  %868 = vmatprep.subr.mxu0 0.0
  %869 = vmatpush1.msra.mxu0 0.0
  %870 = vmatprep.subr.mxu0 0.0
  %871 = vmatpush1.msra.mxu0 0.0
  %872 = vmatprep.subr.mxu0 0.0
  %873 = vmatpush1.msra.mxu0 0.0
  %874 = vmatprep.subr.mxu0 0.0
  %875 = vmatpush1.msra.mxu0 0.0
  %876 = vmatprep.subr.mxu0 0.0
  %877 = vmatpush1.msra.mxu0 0.0
  %878 = vmatprep.subr.mxu0 0.0
  %879 = vmatpush1.msra.mxu0 0.0
  %880 = vmatprep.subr.mxu0 0.0
  %881 = vmatpush1.msra.mxu0 0.0
  %882 = vmatprep.mubr.f32.mxu0 0.0
  %883 = vmatmul.mubr.f32.gmra.mrb[0].mxu0 %v816
  %v884 = vpop.f32.mrb[0].mxu0
  %v885 = vadd.f32 0.0, %v884
  %v886 = vpop.f32.mrb[0].mxu0
  %887 = vdwg.mxu0
  %v888 = vadd.f32 %v812, %v885
  %v889 = vxor.u32 %v888, 2147483648
  %v890 = vmul.f32 %v889, 1.442695
  %v891 = vpow.pop %v890
  %v892 = vadd.f32 %v891, 1.0
  %v893 = vrcp.pop %v892
  %v894 = vmul.f32 1.0, %v893
  %v895 = vadd.f32 %v885, %v474
  %897 = vrot.lane.b32.xlu0 %v895, 64
  %v898 = vpop.permute.xlu0 %897
  %v900 = vmul.f32 %v894, %v898
  %902 = vrot.lane.b32.xlu0 %v900, 64
  %v903 = vpop.permute.xlu0 %902
  %v905 = vadd.f32 %v812, %v903
  %v906 = vtanh.pop %v905
  %v907 = vsub.f32 1.0, %v894
  %909 = vrot.lane.b32.xlu0 %v906, 96
  %v910 = vpop.permute.xlu0 %909
  %v912 = vmul.f32 %v907, %v910
  %v913 = vmul.f32 %v894, %v810
  %v914 = vadd.f32 %v912, %v913
  %s915 = scalar_lea.vmem [#allocation3], 40
  %v916 = vld [vmem:[%s915] sm:$0xff]
  %918 = vrot.lane.b32.xlu0 %v914, 96
  %v919 = vpop.permute.xlu0 %918
  %v920 = vsel %vm242, %v919, 0
  %922 = vmatprep.subr.mxu0 0.0
  %923 = vmatpush1.msra.mxu0 %v381
  %924 = vmatprep.subr.mxu0 0.0
  %925 = vmatpush1.msra.mxu0 %v382
  %926 = vmatprep.subr.mxu0 0.0
  %927 = vmatpush1.msra.mxu0 %v383
  %928 = vmatprep.subr.mxu0 0.0
  %929 = vmatpush1.msra.mxu0 %v384
  %930 = vmatprep.subr.mxu0 0.0
  %931 = vmatpush1.msra.mxu0 0.0
  %932 = vmatprep.subr.mxu0 0.0
  %933 = vmatpush1.msra.mxu0 0.0
  %934 = vmatprep.subr.mxu0 0.0
  %935 = vmatpush1.msra.mxu0 0.0
  %936 = vmatprep.subr.mxu0 0.0
  %937 = vmatpush1.msra.mxu0 0.0
  %938 = vmatprep.subr.mxu0 0.0
  %939 = vmatpush1.msra.mxu0 0.0
  %940 = vmatprep.subr.mxu0 0.0
  %941 = vmatpush1.msra.mxu0 0.0
  %942 = vmatprep.subr.mxu0 0.0
  %943 = vmatpush1.msra.mxu0 0.0
  %944 = vmatprep.subr.mxu0 0.0
  %945 = vmatpush1.msra.mxu0 0.0
  %946 = vmatprep.subr.mxu0 0.0
  %947 = vmatpush1.msra.mxu0 0.0
  %948 = vmatprep.subr.mxu0 0.0
  %949 = vmatpush1.msra.mxu0 0.0
  %950 = vmatprep.subr.mxu0 0.0
  %951 = vmatpush1.msra.mxu0 0.0
  %952 = vmatprep.subr.mxu0 0.0
  %953 = vmatpush1.msra.mxu0 0.0
  %954 = vmatprep.subr.mxu0 0.0
  %955 = vmatpush1.msra.mxu0 0.0
  %956 = vmatprep.subr.mxu0 0.0
  %957 = vmatpush1.msra.mxu0 0.0
  %958 = vmatprep.subr.mxu0 0.0
  %959 = vmatpush1.msra.mxu0 0.0
  %960 = vmatprep.subr.mxu0 0.0
  %961 = vmatpush1.msra.mxu0 0.0
  %962 = vmatprep.subr.mxu0 0.0
  %963 = vmatpush1.msra.mxu0 0.0
  %964 = vmatprep.subr.mxu0 0.0
  %965 = vmatpush1.msra.mxu0 0.0
  %966 = vmatprep.subr.mxu0 0.0
  %967 = vmatpush1.msra.mxu0 0.0
  %968 = vmatprep.subr.mxu0 0.0
  %969 = vmatpush1.msra.mxu0 0.0
  %970 = vmatprep.subr.mxu0 0.0
  %971 = vmatpush1.msra.mxu0 0.0
  %972 = vmatprep.subr.mxu0 0.0
  %973 = vmatpush1.msra.mxu0 0.0
  %974 = vmatprep.subr.mxu0 0.0
  %975 = vmatpush1.msra.mxu0 0.0
  %976 = vmatprep.subr.mxu0 0.0
  %977 = vmatpush1.msra.mxu0 0.0
  %978 = vmatprep.subr.mxu0 0.0
  %979 = vmatpush1.msra.mxu0 0.0
  %980 = vmatprep.subr.mxu0 0.0
  %981 = vmatpush1.msra.mxu0 0.0
  %982 = vmatprep.subr.mxu0 0.0
  %983 = vmatpush1.msra.mxu0 0.0
  %984 = vmatprep.subr.mxu0 0.0
  %985 = vmatpush1.msra.mxu0 0.0
  %986 = vmatprep.mubr.f32.mxu0 0.0
  %987 = vmatmul.mubr.f32.gmra.mrb[0].mxu0 %v920
  %v988 = vpop.f32.mrb[0].mxu0
  %v989 = vadd.f32 0.0, %v988
  %v990 = vpop.f32.mrb[0].mxu0
  %991 = vdwg.mxu0
  %v992 = vadd.f32 %v916, %v989
  %v993 = vxor.u32 %v992, 2147483648
  %v994 = vmul.f32 %v993, 1.442695
  %v995 = vpow.pop %v994
  %v996 = vadd.f32 %v995, 1.0
  %v997 = vrcp.pop %v996
  %v998 = vmul.f32 1.0, %v997
  %v999 = vadd.f32 %v989, %v474
  %1001 = vrot.lane.b32.xlu0 %v999, 64
  %v1002 = vpop.permute.xlu0 %1001
  %v1004 = vmul.f32 %v998, %v1002
  %1006 = vrot.lane.b32.xlu0 %v1004, 64
  %v1007 = vpop.permute.xlu0 %1006
  %v1009 = vadd.f32 %v916, %v1007
  %v1010 = vtanh.pop %v1009
  %v1011 = vsub.f32 1.0, %v998
  %1013 = vrot.lane.b32.xlu0 %v1010, 96
  %v1014 = vpop.permute.xlu0 %1013
  %v1016 = vmul.f32 %v1011, %v1014
  %v1017 = vmul.f32 %v998, %v914
  %v1018 = vadd.f32 %v1016, %v1017
  %s1019 = scalar_lea.vmem [#allocation3], 48
  %v1020 = vld [vmem:[%s1019] sm:$0xff]
  %1022 = vrot.lane.b32.xlu0 %v1018, 96
  %v1023 = vpop.permute.xlu0 %1022
  %v1024 = vsel %vm242, %v1023, 0
  %1026 = vmatprep.subr.mxu0 0.0
  %1027 = vmatpush1.msra.mxu0 %v381
  %1028 = vmatprep.subr.mxu0 0.0
  %1029 = vmatpush1.msra.mxu0 %v382
  %1030 = vmatprep.subr.mxu0 0.0
  %1031 = vmatpush1.msra.mxu0 %v383
  %1032 = vmatprep.subr.mxu0 0.0
  %1033 = vmatpush1.msra.mxu0 %v384
  %1034 = vmatprep.subr.mxu0 0.0
  %1035 = vmatpush1.msra.mxu0 0.0
  %1036 = vmatprep.subr.mxu0 0.0
  %1037 = vmatpush1.msra.mxu0 0.0
  %1038 = vmatprep.subr.mxu0 0.0
  %1039 = vmatpush1.msra.mxu0 0.0
  %1040 = vmatprep.subr.mxu0 0.0
  %1041 = vmatpush1.msra.mxu0 0.0
  %1042 = vmatprep.subr.mxu0 0.0
  %1043 = vmatpush1.msra.mxu0 0.0
  %1044 = vmatprep.subr.mxu0 0.0
  %1045 = vmatpush1.msra.mxu0 0.0
  %1046 = vmatprep.subr.mxu0 0.0
  %1047 = vmatpush1.msra.mxu0 0.0
  %1048 = vmatprep.subr.mxu0 0.0
  %1049 = vmatpush1.msra.mxu0 0.0
  %1050 = vmatprep.subr.mxu0 0.0
  %1051 = vmatpush1.msra.mxu0 0.0
  %1052 = vmatprep.subr.mxu0 0.0
  %1053 = vmatpush1.msra.mxu0 0.0
  %1054 = vmatprep.subr.mxu0 0.0
  %1055 = vmatpush1.msra.mxu0 0.0
  %1056 = vmatprep.subr.mxu0 0.0
  %1057 = vmatpush1.msra.mxu0 0.0
  %1058 = vmatprep.subr.mxu0 0.0
  %1059 = vmatpush1.msra.mxu0 0.0
  %1060 = vmatprep.subr.mxu0 0.0
  %1061 = vmatpush1.msra.mxu0 0.0
  %1062 = vmatprep.subr.mxu0 0.0
  %1063 = vmatpush1.msra.mxu0 0.0
  %1064 = vmatprep.subr.mxu0 0.0
  %1065 = vmatpush1.msra.mxu0 0.0
  %1066 = vmatprep.subr.mxu0 0.0
  %1067 = vmatpush1.msra.mxu0 0.0
  %1068 = vmatprep.subr.mxu0 0.0
  %1069 = vmatpush1.msra.mxu0 0.0
  %1070 = vmatprep.subr.mxu0 0.0
  %1071 = vmatpush1.msra.mxu0 0.0
  %1072 = vmatprep.subr.mxu0 0.0
  %1073 = vmatpush1.msra.mxu0 0.0
  %1074 = vmatprep.subr.mxu0 0.0
  %1075 = vmatpush1.msra.mxu0 0.0
  %1076 = vmatprep.subr.mxu0 0.0
  %1077 = vmatpush1.msra.mxu0 0.0
  %1078 = vmatprep.subr.mxu0 0.0
  %1079 = vmatpush1.msra.mxu0 0.0
  %1080 = vmatprep.subr.mxu0 0.0
  %1081 = vmatpush1.msra.mxu0 0.0
  %1082 = vmatprep.subr.mxu0 0.0
  %1083 = vmatpush1.msra.mxu0 0.0
  %1084 = vmatprep.subr.mxu0 0.0
  %1085 = vmatpush1.msra.mxu0 0.0
  %1086 = vmatprep.subr.mxu0 0.0
  %1087 = vmatpush1.msra.mxu0 0.0
  %1088 = vmatprep.subr.mxu0 0.0
  %1089 = vmatpush1.msra.mxu0 0.0
  %1090 = vmatprep.mubr.f32.mxu0 0.0
  %1091 = vmatmul.mubr.f32.gmra.mrb[0].mxu0 %v1024
  %v1092 = vpop.f32.mrb[0].mxu0
  %v1093 = vadd.f32 0.0, %v1092
  %v1094 = vpop.f32.mrb[0].mxu0
  %1095 = vdwg.mxu0
  %v1096 = vadd.f32 %v1020, %v1093
  %v1097 = vxor.u32 %v1096, 2147483648
  %v1098 = vmul.f32 %v1097, 1.442695
  %v1099 = vpow.pop %v1098
  %v1100 = vadd.f32 %v1099, 1.0
  %v1101 = vrcp.pop %v1100
  %v1102 = vmul.f32 1.0, %v1101
  %v1103 = vadd.f32 %v1093, %v474
  %1105 = vrot.lane.b32.xlu0 %v1103, 64
  %v1106 = vpop.permute.xlu0 %1105
  %v1108 = vmul.f32 %v1102, %v1106
  %1110 = vrot.lane.b32.xlu0 %v1108, 64
  %v1111 = vpop.permute.xlu0 %1110
  %v1113 = vadd.f32 %v1020, %v1111
  %v1114 = vtanh.pop %v1113
  %v1115 = vsub.f32 1.0, %v1102
  %1117 = vrot.lane.b32.xlu0 %v1114, 96
  %v1118 = vpop.permute.xlu0 %1117
  %v1120 = vmul.f32 %v1115, %v1118
  %v1121 = vmul.f32 %v1102, %v1018
  %v1122 = vadd.f32 %v1120, %v1121
  %s1123 = scalar_lea.vmem [#allocation3], 56
  %v1124 = vld [vmem:[%s1123] sm:$0xff]
  %1126 = vrot.lane.b32.xlu0 %v1122, 96
  %v1127 = vpop.permute.xlu0 %1126
  %v1128 = vsel %vm242, %v1127, 0
  %1130 = vmatprep.subr.mxu0 0.0
  %1131 = vmatpush1.msra.mxu0 %v381
  %1132 = vmatprep.subr.mxu0 0.0
  %1133 = vmatpush1.msra.mxu0 %v382
  %1134 = vmatprep.subr.mxu0 0.0
  %1135 = vmatpush1.msra.mxu0 %v383
  %1136 = vmatprep.subr.mxu0 0.0
  %1137 = vmatpush1.msra.mxu0 %v384
  %1138 = vmatprep.subr.mxu0 0.0
  %1139 = vmatpush1.msra.mxu0 0.0
  %1140 = vmatprep.subr.mxu0 0.0
  %1141 = vmatpush1.msra.mxu0 0.0
  %1142 = vmatprep.subr.mxu0 0.0
  %1143 = vmatpush1.msra.mxu0 0.0
  %1144 = vmatprep.subr.mxu0 0.0
  %1145 = vmatpush1.msra.mxu0 0.0
  %1146 = vmatprep.subr.mxu0 0.0
  %1147 = vmatpush1.msra.mxu0 0.0
  %1148 = vmatprep.subr.mxu0 0.0
  %1149 = vmatpush1.msra.mxu0 0.0
  %1150 = vmatprep.subr.mxu0 0.0
  %1151 = vmatpush1.msra.mxu0 0.0
  %1152 = vmatprep.subr.mxu0 0.0
  %1153 = vmatpush1.msra.mxu0 0.0
  %1154 = vmatprep.subr.mxu0 0.0
  %1155 = vmatpush1.msra.mxu0 0.0
  %1156 = vmatprep.subr.mxu0 0.0
  %1157 = vmatpush1.msra.mxu0 0.0
  %1158 = vmatprep.subr.mxu0 0.0
  %1159 = vmatpush1.msra.mxu0 0.0
  %1160 = vmatprep.subr.mxu0 0.0
  %1161 = vmatpush1.msra.mxu0 0.0
  %1162 = vmatprep.subr.mxu0 0.0
  %1163 = vmatpush1.msra.mxu0 0.0
  %1164 = vmatprep.subr.mxu0 0.0
  %1165 = vmatpush1.msra.mxu0 0.0
  %1166 = vmatprep.subr.mxu0 0.0
  %1167 = vmatpush1.msra.mxu0 0.0
  %1168 = vmatprep.subr.mxu0 0.0
  %1169 = vmatpush1.msra.mxu0 0.0
  %1170 = vmatprep.subr.mxu0 0.0
  %1171 = vmatpush1.msra.mxu0 0.0
  %1172 = vmatprep.subr.mxu0 0.0
  %1173 = vmatpush1.msra.mxu0 0.0
  %1174 = vmatprep.subr.mxu0 0.0
  %1175 = vmatpush1.msra.mxu0 0.0
  %1176 = vmatprep.subr.mxu0 0.0
  %1177 = vmatpush1.msra.mxu0 0.0
  %1178 = vmatprep.subr.mxu0 0.0
  %1179 = vmatpush1.msra.mxu0 0.0
  %1180 = vmatprep.subr.mxu0 0.0
  %1181 = vmatpush1.msra.mxu0 0.0
  %1182 = vmatprep.subr.mxu0 0.0
  %1183 = vmatpush1.msra.mxu0 0.0
  %1184 = vmatprep.subr.mxu0 0.0
  %1185 = vmatpush1.msra.mxu0 0.0
  %1186 = vmatprep.subr.mxu0 0.0
  %1187 = vmatpush1.msra.mxu0 0.0
  %1188 = vmatprep.subr.mxu0 0.0
  %1189 = vmatpush1.msra.mxu0 0.0
  %1190 = vmatprep.subr.mxu0 0.0
  %1191 = vmatpush1.msra.mxu0 0.0
  %1192 = vmatprep.subr.mxu0 0.0
  %1193 = vmatpush1.msra.mxu0 0.0
  %1194 = vmatprep.mubr.f32.mxu0 0.0
  %1195 = vmatmul.mubr.f32.gmra.mrb[0].mxu0 %v1128
  %v1196 = vpop.f32.mrb[0].mxu0
  %v1197 = vadd.f32 0.0, %v1196
  %v1198 = vpop.f32.mrb[0].mxu0
  %1199 = vdwg.mxu0
  %v1200 = vadd.f32 %v1124, %v1197
  %v1201 = vxor.u32 %v1200, 2147483648
  %v1202 = vmul.f32 %v1201, 1.442695
  %v1203 = vpow.pop %v1202
  %v1204 = vadd.f32 %v1203, 1.0
  %v1205 = vrcp.pop %v1204
  %v1206 = vmul.f32 1.0, %v1205
  %v1207 = vadd.f32 %v1197, %v474
  %1209 = vrot.lane.b32.xlu0 %v1207, 64
  %v1210 = vpop.permute.xlu0 %1209
  %v1212 = vmul.f32 %v1206, %v1210
  %1214 = vrot.lane.b32.xlu0 %v1212, 64
  %v1215 = vpop.permute.xlu0 %1214
  %v1217 = vadd.f32 %v1124, %v1215
  %v1218 = vtanh.pop %v1217
  %v1219 = vsub.f32 1.0, %v1206
  %1221 = vrot.lane.b32.xlu0 %v1218, 96
  %v1222 = vpop.permute.xlu0 %1221
  %v1224 = vmul.f32 %v1219, %v1222
  %v1225 = vmul.f32 %v1206, %v1122
  %v1226 = vadd.f32 %v1224, %v1225
  %1228 = vrot.lane.b32.xlu0 %v1226, 96
  %v1229 = vpop.permute.xlu0 %1228
  %1231 = vst.msk [vmem:[#allocation2] sm:$0xff] %vm242, %v1229
  // Predicated region
  $region50: #{tpu_custom_call.1} parent=0 // pred_check
    %p1232 = pneg %p38
  $region51: #{tpu_custom_call.1} parent=0 // pred_check_branch
    %1234 = sbr.rel (%p1232) target = $region53
  $region52: #{tpu_custom_call.1} parent=0 // pred_region
    %v1235 = vld [vmem:[%s0 + $0x38] sm:$0xff]
    %1236 = vset.pattern.permute.xlu0 0
    %1237 = vperm.xlu0 %1236, %v1235
    %v1238 = vpop.permute.xlu0 %1237
    %vm1239 = vcmp.eq.s32.totalorder %v1238, %v53
    %v1240 = vsel %vm1239, 1.0, 0.0
    %v1241 = vld [vmem:[%s1] sm:$0xff]
    %v1242 = vld [vmem:[%s1 + $0x8] sm:$0xff]
    %v1243 = vld [vmem:[%s1 + $0x10] sm:$0xff]
    %v1244 = vld [vmem:[%s1 + $0x18] sm:$0xff]
    %v1245 = vld [vmem:[%s1 + $0x20] sm:$0xff]
    %v1246 = vld [vmem:[%s1 + $0x28] sm:$0xff]
    %v1247 = vld [vmem:[%s1 + $0x30] sm:$0xff]
    %v1249 = vsel %vm101, %v1240, 0
    %1251 = vmatprep.subr.mxu0 0.0
    %1252 = vmatpush1.msra.mxu0 %v1241
    %1253 = vmatprep.subr.mxu0 0.0
    %1254 = vmatpush1.msra.mxu0 %v1242
    %1255 = vmatprep.subr.mxu0 0.0
    %1256 = vmatpush1.msra.mxu0 %v1243
    %1257 = vmatprep.subr.mxu0 0.0
    %1258 = vmatpush1.msra.mxu0 %v1244
    %1259 = vmatprep.subr.mxu0 0.0
    %1260 = vmatpush1.msra.mxu0 %v1245
    %1261 = vmatprep.subr.mxu0 0.0
    %1262 = vmatpush1.msra.mxu0 %v1246
    %1263 = vmatprep.subr.mxu0 0.0
    %1264 = vmatpush1.msra.mxu0 %v1247
    %1265 = vmatprep.subr.mxu0 0.0
    %1266 = vmatpush1.msra.mxu0 0.0
    %1267 = vmatprep.subr.mxu0 0.0
    %1268 = vmatpush1.msra.mxu0 0.0
    %1269 = vmatprep.subr.mxu0 0.0
    %1270 = vmatpush1.msra.mxu0 0.0
    %1271 = vmatprep.subr.mxu0 0.0
    %1272 = vmatpush1.msra.mxu0 0.0
    %1273 = vmatprep.subr.mxu0 0.0
    %1274 = vmatpush1.msra.mxu0 0.0
    %1275 = vmatprep.subr.mxu0 0.0
    %1276 = vmatpush1.msra.mxu0 0.0
    %1277 = vmatprep.subr.mxu0 0.0
    %1278 = vmatpush1.msra.mxu0 0.0
    %1279 = vmatprep.subr.mxu0 0.0
    %1280 = vmatpush1.msra.mxu0 0.0
    %1281 = vmatprep.subr.mxu0 0.0
    %1282 = vmatpush1.msra.mxu0 0.0
    %1283 = vmatprep.subr.mxu0 0.0
    %1284 = vmatpush1.msra.mxu0 0.0
    %1285 = vmatprep.subr.mxu0 0.0
    %1286 = vmatpush1.msra.mxu0 0.0
    %1287 = vmatprep.subr.mxu0 0.0
    %1288 = vmatpush1.msra.mxu0 0.0
    %1289 = vmatprep.subr.mxu0 0.0
    %1290 = vmatpush1.msra.mxu0 0.0
    %1291 = vmatprep.subr.mxu0 0.0
    %1292 = vmatpush1.msra.mxu0 0.0
    %1293 = vmatprep.subr.mxu0 0.0
    %1294 = vmatpush1.msra.mxu0 0.0
    %1295 = vmatprep.subr.mxu0 0.0
    %1296 = vmatpush1.msra.mxu0 0.0
    %1297 = vmatprep.subr.mxu0 0.0
    %1298 = vmatpush1.msra.mxu0 0.0
    %1299 = vmatprep.subr.mxu0 0.0
    %1300 = vmatpush1.msra.mxu0 0.0
    %1301 = vmatprep.subr.mxu0 0.0
    %1302 = vmatpush1.msra.mxu0 0.0
    %1303 = vmatprep.subr.mxu0 0.0
    %1304 = vmatpush1.msra.mxu0 0.0
    %1305 = vmatprep.subr.mxu0 0.0
    %1306 = vmatpush1.msra.mxu0 0.0
    %1307 = vmatprep.subr.mxu0 0.0
    %1308 = vmatpush1.msra.mxu0 0.0
    %1309 = vmatprep.subr.mxu0 0.0
    %1310 = vmatpush1.msra.mxu0 0.0
    %1311 = vmatprep.subr.mxu0 0.0
    %1312 = vmatpush1.msra.mxu0 0.0
    %1313 = vmatprep.subr.mxu0 0.0
    %1314 = vmatpush1.msra.mxu0 0.0
    %1315 = vmatprep.mubr.f32.mxu0 0.0
    %1316 = vmatmul.mubr.f32.gmra.mrb[0].mxu0 %v1249
    %v1317 = vpop.f32.mrb[0].mxu0
    %v1318 = vadd.f32 0.0, %v1317
    %v1319 = vpop.f32.mrb[0].mxu0
    %1320 = vdwg.mxu0
    %v1321 = vld [vmem:[%s6] sm:$0xff]
    %v1322 = vld [vmem:[%s6 + $0x8] sm:$0xff]
    %v1323 = vld [vmem:[%s6 + $0x10] sm:$0xff]
    %v1324 = vld [vmem:[%s6 + $0x18] sm:$0xff]
    %v1325 = vld [vmem:[%s7] sm:$0x1]
    %v1327 = vlaneseq
    %v1328 = vshrl.u32 %v1327, 7
    %v1329 = vsub.s32 0, %v1328
    %v1330 = vrot.slane %v1325, %v1329
    %v1333 = vsel %vm242, %v1318, 0
    %1335 = vmatprep.subr.mxu0 0.0
    %1336 = vmatpush1.msra.mxu0 %v1321
    %1337 = vmatprep.subr.mxu0 0.0
    %1338 = vmatpush1.msra.mxu0 %v1322
    %1339 = vmatprep.subr.mxu0 0.0
    %1340 = vmatpush1.msra.mxu0 %v1323
    %1341 = vmatprep.subr.mxu0 0.0
    %1342 = vmatpush1.msra.mxu0 %v1324
    %1343 = vmatprep.subr.mxu0 0.0
    %1344 = vmatpush1.msra.mxu0 0.0
    %1345 = vmatprep.subr.mxu0 0.0
    %1346 = vmatpush1.msra.mxu0 0.0
    %1347 = vmatprep.subr.mxu0 0.0
    %1348 = vmatpush1.msra.mxu0 0.0
    %1349 = vmatprep.subr.mxu0 0.0
    %1350 = vmatpush1.msra.mxu0 0.0
    %1351 = vmatprep.subr.mxu0 0.0
    %1352 = vmatpush1.msra.mxu0 0.0
    %1353 = vmatprep.subr.mxu0 0.0
    %1354 = vmatpush1.msra.mxu0 0.0
    %1355 = vmatprep.subr.mxu0 0.0
    %1356 = vmatpush1.msra.mxu0 0.0
    %1357 = vmatprep.subr.mxu0 0.0
    %1358 = vmatpush1.msra.mxu0 0.0
    %1359 = vmatprep.subr.mxu0 0.0
    %1360 = vmatpush1.msra.mxu0 0.0
    %1361 = vmatprep.subr.mxu0 0.0
    %1362 = vmatpush1.msra.mxu0 0.0
    %1363 = vmatprep.subr.mxu0 0.0
    %1364 = vmatpush1.msra.mxu0 0.0
    %1365 = vmatprep.subr.mxu0 0.0
    %1366 = vmatpush1.msra.mxu0 0.0
    %1367 = vmatprep.subr.mxu0 0.0
    %1368 = vmatpush1.msra.mxu0 0.0
    %1369 = vmatprep.subr.mxu0 0.0
    %1370 = vmatpush1.msra.mxu0 0.0
    %1371 = vmatprep.subr.mxu0 0.0
    %1372 = vmatpush1.msra.mxu0 0.0
    %1373 = vmatprep.subr.mxu0 0.0
    %1374 = vmatpush1.msra.mxu0 0.0
    %1375 = vmatprep.subr.mxu0 0.0
    %1376 = vmatpush1.msra.mxu0 0.0
    %1377 = vmatprep.subr.mxu0 0.0
    %1378 = vmatpush1.msra.mxu0 0.0
    %1379 = vmatprep.subr.mxu0 0.0
    %1380 = vmatpush1.msra.mxu0 0.0
    %1381 = vmatprep.subr.mxu0 0.0
    %1382 = vmatpush1.msra.mxu0 0.0
    %1383 = vmatprep.subr.mxu0 0.0
    %1384 = vmatpush1.msra.mxu0 0.0
    %1385 = vmatprep.subr.mxu0 0.0
    %1386 = vmatpush1.msra.mxu0 0.0
    %1387 = vmatprep.subr.mxu0 0.0
    %1388 = vmatpush1.msra.mxu0 0.0
    %1389 = vmatprep.subr.mxu0 0.0
    %1390 = vmatpush1.msra.mxu0 0.0
    %1391 = vmatprep.subr.mxu0 0.0
    %1392 = vmatpush1.msra.mxu0 0.0
    %1393 = vmatprep.subr.mxu0 0.0
    %1394 = vmatpush1.msra.mxu0 0.0
    %1395 = vmatprep.subr.mxu0 0.0
    %1396 = vmatpush1.msra.mxu0 0.0
    %1397 = vmatprep.subr.mxu0 0.0
    %1398 = vmatpush1.msra.mxu0 0.0
    %1399 = vmatprep.mubr.f32.mxu0 0.0
    %1400 = vmatmul.mubr.f32.gmra.mrb[0].mxu0 %v1333
    %v1401 = vpop.f32.mrb[0].mxu0
    %v1402 = vadd.f32 %v1330, %v1401
    %v1403 = vpop.f32.mrb[0].mxu0
    %1404 = vdwg.mxu0
    %v1405 = vxor.u32 %v1402, 2147483648
    %v1406 = vmul.f32 %v1405, 1.442695
    %v1407 = vpow.pop %v1406
    %v1408 = vadd.f32 %v1407, 1.0
    %v1409 = vrcp.pop %v1408
    %v1410 = vmul.f32 1.0, %v1409
    %v1411 = vld [vmem:[%s8] sm:$0x1]
    %v1413 = vlaneseq
    %v1414 = vshrl.u32 %v1413, 7
    %v1415 = vsub.s32 0, %v1414
    %v1416 = vrot.slane %v1411, %v1415
    %v1418 = vmul.f32 %v1410, %v1416
    %1420 = vrot.lane.b32.xlu0 %v1418, 64
    %v1421 = vpop.permute.xlu0 %1420
    %v1423 = vadd.f32 %v1402, %v1421
    %v1424 = vtanh.pop %v1423
    %v1425 = vsub.f32 1.0, %v1410
    %1427 = vrot.lane.b32.xlu0 %v1424, 96
    %v1428 = vpop.permute.xlu0 %1427
    %v1430 = vmul.f32 %v1425, %v1428
    %v1431 = vld [vmem:[%s9] sm:$0xff]
    %v1432 = vld [vmem:[%s9 + $0x8] sm:$0xff]
    %v1433 = vld [vmem:[%s9 + $0x10] sm:$0xff]
    %v1434 = vld [vmem:[%s9 + $0x18] sm:$0xff]
    %v1435 = vld [vmem:[%s9 + $0x20] sm:$0xff]
    %v1436 = vld [vmem:[%s9 + $0x28] sm:$0xff]
    %v1437 = vld [vmem:[%s9 + $0x30] sm:$0xff]
    %v1438 = vld [vmem:[%s9 + $0x38] sm:$0xff]
    %1440 = vrot.lane.b32.xlu0 %v1430, 96
    %v1441 = vpop.permute.xlu0 %1440
    %v1442 = vsel %vm242, %v1441, 0
    %1444 = vmatprep.subr.mxu0 0.0
    %1445 = vmatpush1.msra.mxu0 %v1435
    %1446 = vmatprep.subr.mxu0 0.0
    %1447 = vmatpush1.msra.mxu0 %v1436
    %1448 = vmatprep.subr.mxu0 0.0
    %1449 = vmatpush1.msra.mxu0 %v1437
    %1450 = vmatprep.subr.mxu0 0.0
    %1451 = vmatpush1.msra.mxu0 %v1438
    %1452 = vmatprep.subr.mxu0 0.0
    %1453 = vmatpush1.msra.mxu0 0.0
    %1454 = vmatprep.subr.mxu0 0.0
    %1455 = vmatpush1.msra.mxu0 0.0
    %1456 = vmatprep.subr.mxu0 0.0
    %1457 = vmatpush1.msra.mxu0 0.0
    %1458 = vmatprep.subr.mxu0 0.0
    %1459 = vmatpush1.msra.mxu0 0.0
    %1460 = vmatprep.subr.mxu0 0.0
    %1461 = vmatpush1.msra.mxu0 0.0
    %1462 = vmatprep.subr.mxu0 0.0
    %1463 = vmatpush1.msra.mxu0 0.0
    %1464 = vmatprep.subr.mxu0 0.0
    %1465 = vmatpush1.msra.mxu0 0.0
    %1466 = vmatprep.subr.mxu0 0.0
    %1467 = vmatpush1.msra.mxu0 0.0
    %1468 = vmatprep.subr.mxu0 0.0
    %1469 = vmatpush1.msra.mxu0 0.0
    %1470 = vmatprep.subr.mxu0 0.0
    %1471 = vmatpush1.msra.mxu0 0.0
    %1472 = vmatprep.subr.mxu0 0.0
    %1473 = vmatpush1.msra.mxu0 0.0
    %1474 = vmatprep.subr.mxu0 0.0
    %1475 = vmatpush1.msra.mxu0 0.0
    %1476 = vmatprep.subr.mxu0 0.0
    %1477 = vmatpush1.msra.mxu0 0.0
    %1478 = vmatprep.subr.mxu0 0.0
    %1479 = vmatpush1.msra.mxu0 0.0
    %1480 = vmatprep.subr.mxu0 0.0
    %1481 = vmatpush1.msra.mxu0 0.0
    %1482 = vmatprep.subr.mxu0 0.0
    %1483 = vmatpush1.msra.mxu0 0.0
    %1484 = vmatprep.subr.mxu0 0.0
    %1485 = vmatpush1.msra.mxu0 0.0
    %1486 = vmatprep.subr.mxu0 0.0
    %1487 = vmatpush1.msra.mxu0 0.0
    %1488 = vmatprep.subr.mxu0 0.0
    %1489 = vmatpush1.msra.mxu0 0.0
    %1490 = vmatprep.subr.mxu0 0.0
    %1491 = vmatpush1.msra.mxu0 0.0
    %1492 = vmatprep.subr.mxu0 0.0
    %1493 = vmatpush1.msra.mxu0 0.0
    %1494 = vmatprep.subr.mxu0 0.0
    %1495 = vmatpush1.msra.mxu0 0.0
    %1496 = vmatprep.subr.mxu0 0.0
    %1497 = vmatpush1.msra.mxu0 0.0
    %1498 = vmatprep.subr.mxu0 0.0
    %1499 = vmatpush1.msra.mxu0 0.0
    %1500 = vmatprep.subr.mxu0 0.0
    %1501 = vmatpush1.msra.mxu0 0.0
    %1502 = vmatprep.subr.mxu0 0.0
    %1503 = vmatpush1.msra.mxu0 0.0
    %1504 = vmatprep.subr.mxu0 0.0
    %1505 = vmatpush1.msra.mxu0 0.0
    %1506 = vmatprep.subr.mxu0 0.0
    %1507 = vmatpush1.msra.mxu0 0.0
    %1508 = vmatprep.mubr.f32.mxu0 0.0
    %1509 = vmatmul.mubr.f32.gmra.mrb[0].mxu0 %v1442
    %v1510 = vpop.f32.mrb[0].mxu0
    %v1511 = vadd.f32 0.0, %v1510
    %v1512 = vpop.f32.mrb[0].mxu0
    %1513 = vdwg.mxu0
    %v1514 = vsel %vm242, %v1229, 0
    %1516 = vmatprep.subr.mxu0 0.0
    %1517 = vmatpush1.msra.mxu0 %v1431
    %1518 = vmatprep.subr.mxu0 0.0
    %1519 = vmatpush1.msra.mxu0 %v1432
    %1520 = vmatprep.subr.mxu0 0.0
    %1521 = vmatpush1.msra.mxu0 %v1433
    %1522 = vmatprep.subr.mxu0 0.0
    %1523 = vmatpush1.msra.mxu0 %v1434
    %1524 = vmatprep.subr.mxu0 0.0
    %1525 = vmatpush1.msra.mxu0 0.0
    %1526 = vmatprep.subr.mxu0 0.0
    %1527 = vmatpush1.msra.mxu0 0.0
    %1528 = vmatprep.subr.mxu0 0.0
    %1529 = vmatpush1.msra.mxu0 0.0
    %1530 = vmatprep.subr.mxu0 0.0
    %1531 = vmatpush1.msra.mxu0 0.0
    %1532 = vmatprep.subr.mxu0 0.0
    %1533 = vmatpush1.msra.mxu0 0.0
    %1534 = vmatprep.subr.mxu0 0.0
    %1535 = vmatpush1.msra.mxu0 0.0
    %1536 = vmatprep.subr.mxu0 0.0
    %1537 = vmatpush1.msra.mxu0 0.0
    %1538 = vmatprep.subr.mxu0 0.0
    %1539 = vmatpush1.msra.mxu0 0.0
    %1540 = vmatprep.subr.mxu0 0.0
    %1541 = vmatpush1.msra.mxu0 0.0
    %1542 = vmatprep.subr.mxu0 0.0
    %1543 = vmatpush1.msra.mxu0 0.0
    %1544 = vmatprep.subr.mxu0 0.0
    %1545 = vmatpush1.msra.mxu0 0.0
    %1546 = vmatprep.subr.mxu0 0.0
    %1547 = vmatpush1.msra.mxu0 0.0
    %1548 = vmatprep.subr.mxu0 0.0
    %1549 = vmatpush1.msra.mxu0 0.0
    %1550 = vmatprep.subr.mxu0 0.0
    %1551 = vmatpush1.msra.mxu0 0.0
    %1552 = vmatprep.subr.mxu0 0.0
    %1553 = vmatpush1.msra.mxu0 0.0
    %1554 = vmatprep.subr.mxu0 0.0
    %1555 = vmatpush1.msra.mxu0 0.0
    %1556 = vmatprep.subr.mxu0 0.0
    %1557 = vmatpush1.msra.mxu0 0.0
    %1558 = vmatprep.subr.mxu0 0.0
    %1559 = vmatpush1.msra.mxu0 0.0
    %1560 = vmatprep.subr.mxu0 0.0
    %1561 = vmatpush1.msra.mxu0 0.0
    %1562 = vmatprep.subr.mxu0 0.0
    %1563 = vmatpush1.msra.mxu0 0.0
    %1564 = vmatprep.subr.mxu0 0.0
    %1565 = vmatpush1.msra.mxu0 0.0
    %1566 = vmatprep.subr.mxu0 0.0
    %1567 = vmatpush1.msra.mxu0 0.0
    %1568 = vmatprep.subr.mxu0 0.0
    %1569 = vmatpush1.msra.mxu0 0.0
    %1570 = vmatprep.subr.mxu0 0.0
    %1571 = vmatpush1.msra.mxu0 0.0
    %1572 = vmatprep.subr.mxu0 0.0
    %1573 = vmatpush1.msra.mxu0 0.0
    %1574 = vmatprep.subr.mxu0 0.0
    %1575 = vmatpush1.msra.mxu0 0.0
    %1576 = vmatprep.subr.mxu0 0.0
    %1577 = vmatpush1.msra.mxu0 0.0
    %1578 = vmatprep.subr.mxu0 0.0
    %1579 = vmatpush1.msra.mxu0 0.0
    %1580 = vmatprep.mubr.f32.mxu0 0.0
    %1581 = vmatmul.mubr.f32.gmra.mrb[0].mxu0 %v1514
    %v1582 = vpop.f32.mrb[0].mxu0
    %v1583 = vadd.f32 %v1511, %v1582
    %v1584 = vpop.f32.mrb[0].mxu0
    %1585 = vdwg.mxu0
    %v1586 = vld [vmem:[%s10] sm:$0x1]
    %v1588 = vlaneseq
    %v1589 = vshrl.u32 %v1588, 7
    %v1590 = vsub.s32 0, %v1589
    %v1591 = vrot.slane %v1586, %v1590
    %v1593 = vadd.f32 %v1583, %v1591
    %vm1594 = vcmask 31744
    %v1595 = vsel %vm1594, %v1593, -inf
    %1596 = vmax.xlane.f32.xlu0 %v1595
    %v1597 = vpop.xlane.xlu0 %1596
    %v1598 = vsub.f32 %v1593, %v1597
    %v1599 = vmul.f32 %v1598, 1.442695
    %v1600 = vpow.pop %v1599
    %v1601 = vsel %vm1594, %v1600, 0.0
    %1602 = vadd.xlane.f32.xlu0 %v1601
    %v1603 = vpop.xlane.xlu0 %1602
    %v1604 = vrcp.pop %v1603
    %v1605 = vmul.f32 %v1600, %v1604
    %1606 = vst.msk [vmem:[%s11] sm:$0xff] %vm1594, %v1605
  $region53: #{tpu_custom_call.1} parent=0 // pred_fallthru
    _
  // Predicated region
  $region54: #{tpu_custom_call.1} parent=0 // pred_check
    _
  $region55: #{tpu_custom_call.1} parent=0 // pred_check_branch
    %1608 = sbr.rel (0) target = $region57
  $region56: #{tpu_custom_call.1} parent=0 // pred_region
    _
  $region57: #{tpu_custom_call.1} parent=0 // pred_fallthru
    _
  // Predicated region
  $region58: #{tpu_custom_call.1} parent=0 // pred_check
    _
  $region59: #{tpu_custom_call.1} parent=0 // pred_check_branch
    %1610 = sbr.rel (0) target = $region61
  $region60: #{tpu_custom_call.1} parent=0 // pred_region
    _
  $region61: #{tpu_custom_call.1} parent=0 // pred_fallthru
    _

</llo_original>
